<compile_context>
chip_gen: v5e
topology: v5e:2x2
jax: 0.10.0
libtpu: 0.0.40
codegen_flags: <defaults>
</compile_context>

<pallas_src>
import functools

import jax
import jax.numpy as jnp
from jax.experimental import pallas as pl
from jax.experimental.pallas import tpu as pltpu

# Keep reference-vs-kernel matmul numerics consistent (both request full f32).
jax.config.update("jax_default_matmul_precision", "highest")


def _round_up(x, m):
    return ((x + m - 1) // m) * m


def _cdiv(a, b):
    return -(-a // b)


# ----------------------------------------------------------------------------
# Kernel bodies.  One (TB, D_p) batch tile; weights stay VMEM-resident
# (constant index_map + single-buffered) across the whole grid.
# ----------------------------------------------------------------------------
def _linear(x_f32, w_ref, b_ref):
    cdt = w_ref.dtype
    return jnp.dot(x_f32.astype(cdt), w_ref[...],
                   preferred_element_type=jnp.float32) + b_ref[...]


def _mlp_chain(x_f32, w1, b1, w2, b2, w3, b3, w4, b4, w5, b5, w6, b6):
    # Encoder: 3x (Linear + ReLU)
    h = jnp.maximum(_linear(x_f32, w1, b1), 0.0)
    h = jnp.maximum(_linear(h, w2, b2), 0.0)
    z = jnp.maximum(_linear(h, w3, b3), 0.0)
    # Decoder: Linear+ReLU, Linear+ReLU, Linear
    h = jnp.maximum(_linear(z, w4, b4), 0.0)
    h = jnp.maximum(_linear(h, w5, b5), 0.0)
    return _linear(h, w6, b6)


def mlp_kernel_detrend(x_ref, mean_ref, *refs):
    *w_refs, out_ref = refs
    x = x_ref[...].astype(jnp.float32) - mean_ref[...]      # Detrender 'norm'
    y = _mlp_chain(x, *w_refs)
    out_ref[...] = (y + mean_ref[...]).astype(out_ref.dtype)  # 'denorm'


def mlp_kernel_plain(x_ref, *refs):
    *w_refs, out_ref = refs
    y = _mlp_chain(x_ref[...].astype(jnp.float32), *w_refs)
    out_ref[...] = y.astype(out_ref.dtype)


# ----------------------------------------------------------------------------
# Parameters (deterministic, mimicking nn.Linear default init bounds)
# ----------------------------------------------------------------------------
def make_linear(key, fan_in, fan_out, dtype=jnp.float32):
    kw, kb = jax.random.split(key)
    bound = 1.0 / jnp.sqrt(jnp.float32(fan_in))
    w = jax.random.uniform(kw, (fan_in, fan_out), dtype, -bound, bound)  # (in, out)
    b = jax.random.uniform(kb, (1, fan_out), dtype, -bound, bound)
    return w, b


def init_mlp_params(key, seq_len, num_channels, latent_space_size):
    D = seq_len * num_channels
    dims = [
        (D, D // 2),                    # encoder.linear1
        (D // 2, D // 4),               # encoder.linear2
        (D // 4, latent_space_size),    # encoder.linear3
        (latent_space_size, D // 4),    # decoder.linear1
        (D // 4, D // 2),               # decoder.linear2
        (D // 2, D),                    # decoder.linear3
    ]
    keys = jax.random.split(key, len(dims))
    params = []
    for k, (fi, fo) in zip(keys, dims):
        params.extend(make_linear(k, fi, fo))
    return tuple(params)  # (w1,b1, ..., w6,b6)


# ----------------------------------------------------------------------------
# One-time parameter preparation (pad to 128-lane widths, cast weights).
# Hoisted out of the per-call forward so inference doesn't repeat it.
# ----------------------------------------------------------------------------
def prepare_params(params, compute_dtype=jnp.bfloat16):
    def pad_dim(n):
        return _round_up(n, 128)

    def pad_w(w):
        fi, fo = w.shape
        return jnp.pad(w, ((0, pad_dim(fi) - fi),
                           (0, pad_dim(fo) - fo))).astype(compute_dtype)

    def pad_b(b):
        fo = b.shape[-1]
        return jnp.pad(b.reshape(1, fo),
                       ((0, 0), (0, pad_dim(fo) - fo))).astype(jnp.float32)

    ws = params[0::2]
    bs = params[1::2]
    out = []
    for w, b in zip(ws, bs):
        out.extend((pad_w(w), pad_b(b)))
    return tuple(out)


# ----------------------------------------------------------------------------
# Forward wrapper: batch tiling + pallas_call
# ----------------------------------------------------------------------------
@functools.partial(jax.jit, static_argnames=("use_normalizer", "batch_tile"))
def mlp_forward(X, mean, padded_params, use_normalizer=True, batch_tile=256):
    """X: (B, L, C); mean: (1, 1, C) Detrender mean; padded_params from prepare_params."""
    B, L, C = X.shape
    D = L * C
    pw = padded_params[0::2]
    pb = padded_params[1::2]
    D_p = pw[0].shape[0]
    compute_dtype = pw[0].dtype

    # bf16 activation I/O on the perf path (halves per-tile HBM traffic);
    # f32 I/O on the reference-faithful path.
    io_dtype = jnp.bfloat16 if compute_dtype == jnp.bfloat16 else jnp.float32
    io_item = jnp.dtype(io_dtype).itemsize
    align = 16 if io_dtype == jnp.bfloat16 else 8

    # Balanced batch tiles: minimize all-zero padded rows.
    num_tiles = max(1, _cdiv(B, batch_tile))
    TB = _round_up(_cdiv(B, num_tiles), align)
    B_p = _round_up(B, TB)
    grid = (B_p // TB,)

    x2d = jnp.pad(X.reshape(B, D).astype(io_dtype),
                  ((0, B_p - B), (0, D_p - D)))

    # Activations tiled over batch; weights/biases resident + single-buffered.
    in_specs = [pl.BlockSpec((TB, D_p), lambda i: (i, 0))]
    args = [x2d]
    if use_normalizer:
        # flattened index is l*C + c -> repeat the per-channel mean L times
        mean_flat = jnp.tile(mean.reshape(1, C).astype(jnp.float32), (1, L))
        mean_flat = jnp.pad(mean_flat, ((0, 0), (0, D_p - D)))
        in_specs.append(pl.BlockSpec((1, D_p), lambda i: (0, 0),
                                     pipeline_mode=pl.Buffered(1)))
        args.append(mean_flat)
    for w, b in zip(pw, pb):
        in_specs.append(pl.BlockSpec(w.shape, lambda i: (0, 0),
                                     pipeline_mode=pl.Buffered(1)))
        in_specs.append(pl.BlockSpec(b.shape, lambda i: (0, 0),
                                     pipeline_mode=pl.Buffered(1)))
        args.extend((w, b))
    out_specs = pl.BlockSpec((TB, D_p), lambda i: (i, 0))

    # VMEM budget: single-buffered weights + double-buffered x/out tiles +
    # generous estimate of per-layer f32 intermediates and their cast copies.
    weight_bytes = (sum(w.size * w.dtype.itemsize for w in pw)
                    + sum(b.size * 4 for b in pb))
    act_bytes = 2 * 2 * TB * D_p * io_item            # x + out, double-buffered
    hidden_sum = sum(w.shape[1] for w in pw)
    scratch_bytes = TB * (hidden_sum + D_p) * 6       # f32 intermediates + casts
    vmem_limit = int(1.2 * (weight_bytes + act_bytes + scratch_bytes)) + (4 << 20)
    try:
        phys_vmem = pltpu.get_tpu_info().vmem_capacity_bytes
    except Exception:
        phys_vmem = 64 * 1024 * 1024                  # conservative (v7x per-TC)
    vmem_limit = max(16 << 20, min(vmem_limit, int(0.9 * phys_vmem)))

    # Only split across TensorCores when there are enough batch tiles to
    # amortize a second resident-weight DMA (v7x megacore).
    dim_sem = ("parallel",) if grid[0] >= 4 else ("arbitrary",)

    flops = 2 * B_p * sum(w.shape[0] * w.shape[1] for w in pw)
    bytes_accessed = (weight_bytes + x2d.size * io_item + B_p * D_p * io_item
                      + (D_p * 4 if use_normalizer else 0))

    kernel = mlp_kernel_detrend if use_normalizer else mlp_kernel_plain

    out2d = pl.pallas_call(
        kernel,
        out_shape=jax.ShapeDtypeStruct((B_p, D_p), io_dtype),
        grid=grid,
        in_specs=in_specs,
        out_specs=out_specs,
        compiler_params=pltpu.CompilerParams(
            dimension_semantics=dim_sem,
            vmem_limit_bytes=vmem_limit),
        cost_estimate=pl.CostEstimate(
            flops=flops, transcendentals=0, bytes_accessed=bytes_accessed),
    )(*args)

    return out2d[:B, :D].reshape(B, L, C)


# ----------------------------------------------------------------------------
# Pure-JAX reference (sanity check of the kernel semantics)
# ----------------------------------------------------------------------------
def mlp_reference(X, mean, params, use_normalizer=True):
    B, L, C = X.shape
    w1, b1, w2, b2, w3, b3, w4, b4, w5, b5, w6, b6 = params
    x = X - mean if use_normalizer else X
    h = x.reshape(B, L * C)
    h = jnp.maximum(h @ w1 + b1, 0.0)
    h = jnp.maximum(h @ w2 + b2, 0.0)
    z = jnp.maximum(h @ w3 + b3, 0.0)
    h = jnp.maximum(z @ w4 + b4, 0.0)
    h = jnp.maximum(h @ w5 + b5, 0.0)
    y = (h @ w6 + b6).reshape(B, L, C)
    if use_normalizer:
        y = y + mean
    return y


if __name__ == "__main__":
    # Small shapes consistent with MLP(seq_len, num_channels, latent_space_size, gamma)
    B, L, C = 2, 8, 4          # batch, seq_len, num_channels
    latent_space_size = 16
    key = jax.random.PRNGKey(0)
    kx, kp = jax.random.split(key)

    X = jax.random.normal(kx, (B, L, C), jnp.float32)
    params = init_mlp_params(kp, L, C, latent_space_size)
    # Detrender mean parameter is initialized to zeros in the module
    mean = jnp.zeros((1, 1, C), jnp.float32)

    # --- f32 path, with Detrender (normalization='Detrend') ------------------
    ref_norm = mlp_reference(X, mean, params, use_normalizer=True)
    p_f32 = prepare_params(params, compute_dtype=jnp.float32)
    out_f32 = mlp_forward(X, mean, p_f32, use_normalizer=True)
    out_f32 = jax.block_until_ready(out_f32)
    assert out_f32.shape == (B, L, C)
    assert jnp.allclose(out_f32, ref_norm, atol=2e-3, rtol=2e-3), \
        "f32 kernel mismatch vs reference (detrend path)"

    # --- bf16 perf path, no normalizer (normalization='None') ----------------
    ref_plain = mlp_reference(X, mean, params, use_normalizer=False)
    p_bf16 = prepare_params(params, compute_dtype=jnp.bfloat16)
    out_bf16 = mlp_forward(X, mean, p_bf16, use_normalizer=False)
    out_bf16 = jax.block_until_ready(out_bf16)
    assert out_bf16.shape == (B, L, C)
    assert jnp.allclose(out_bf16.astype(jnp.float32), ref_plain,
                        atol=5e-2, rtol=5e-2), \
        "bf16 kernel mismatch vs reference (plain path)"

    print("KERNEL_OK")
</pallas_src>

<mosaic_0001>
module attributes {stable_mosaic.version = 11 : i64} {
  func.func @mlp_kernel_detrend(%arg0: i32, %arg1: memref<8x128xf32, #tpu.memory_space<vmem>>, %arg2: memref<1x128xf32, #tpu.memory_space<vmem>>, %arg3: memref<128x128xf32, #tpu.memory_space<vmem>>, %arg4: memref<1x128xf32, #tpu.memory_space<vmem>>, %arg5: memref<128x128xf32, #tpu.memory_space<vmem>>, %arg6: memref<1x128xf32, #tpu.memory_space<vmem>>, %arg7: memref<128x128xf32, #tpu.memory_space<vmem>>, %arg8: memref<1x128xf32, #tpu.memory_space<vmem>>, %arg9: memref<128x128xf32, #tpu.memory_space<vmem>>, %arg10: memref<1x128xf32, #tpu.memory_space<vmem>>, %arg11: memref<128x128xf32, #tpu.memory_space<vmem>>, %arg12: memref<1x128xf32, #tpu.memory_space<vmem>>, %arg13: memref<128x128xf32, #tpu.memory_space<vmem>>, %arg14: memref<1x128xf32, #tpu.memory_space<vmem>>, %arg15: memref<8x128xf32, #tpu.memory_space<vmem>>) attributes {dimension_semantics = [#tpu.dimension_semantics<arbitrary>], iteration_bounds = array<i64: 1>, scalar_prefetch = 0 : i64, scratch_operands = 0 : i64, tpu.core_type = #tpu.core_type<tc>, window_params = [{transform_indices = @transform_0, window_bounds = array<i64: 8, 128>}, {pipeline_mode = #tpu.pipeline_mode<synchronous>, transform_indices = @transform_1, window_bounds = array<i64: 1, 128>}, {pipeline_mode = #tpu.pipeline_mode<synchronous>, transform_indices = @transform_2, window_bounds = array<i64: 128, 128>}, {pipeline_mode = #tpu.pipeline_mode<synchronous>, transform_indices = @transform_3, window_bounds = array<i64: 1, 128>}, {pipeline_mode = #tpu.pipeline_mode<synchronous>, transform_indices = @transform_4, window_bounds = array<i64: 128, 128>}, {pipeline_mode = #tpu.pipeline_mode<synchronous>, transform_indices = @transform_5, window_bounds = array<i64: 1, 128>}, {pipeline_mode = #tpu.pipeline_mode<synchronous>, transform_indices = @transform_6, window_bounds = array<i64: 128, 128>}, {pipeline_mode = #tpu.pipeline_mode<synchronous>, transform_indices = @transform_7, window_bounds = array<i64: 1, 128>}, {pipeline_mode = #tpu.pipeline_mode<synchronous>, transform_indices = @transform_8, window_bounds = array<i64: 128, 128>}, {pipeline_mode = #tpu.pipeline_mode<synchronous>, transform_indices = @transform_9, window_bounds = array<i64: 1, 128>}, {pipeline_mode = #tpu.pipeline_mode<synchronous>, transform_indices = @transform_10, window_bounds = array<i64: 128, 128>}, {pipeline_mode = #tpu.pipeline_mode<synchronous>, transform_indices = @transform_11, window_bounds = array<i64: 1, 128>}, {pipeline_mode = #tpu.pipeline_mode<synchronous>, transform_indices = @transform_12, window_bounds = array<i64: 128, 128>}, {pipeline_mode = #tpu.pipeline_mode<synchronous>, transform_indices = @transform_13, window_bounds = array<i64: 1, 128>}, {transform_indices = @transform_14, window_bounds = array<i64: 8, 128>}]} {
    %c0 = arith.constant 0 : index
    %c0_0 = arith.constant 0 : index
    %0 = vector.load %arg1[%c0, %c0_0] : memref<8x128xf32, #tpu.memory_space<vmem>>, vector<8x128xf32>
    %c0_1 = arith.constant 0 : index
    %c0_2 = arith.constant 0 : index
    %1 = vector.load %arg2[%c0_1, %c0_2] : memref<1x128xf32, #tpu.memory_space<vmem>>, vector<1x128xf32>
    %2 = vector.broadcast %1 : vector<1x128xf32> to vector<8x128xf32>
    %3 = arith.subf %0, %2 : vector<8x128xf32>
    %c0_3 = arith.constant 0 : index
    %c0_4 = arith.constant 0 : index
    %4 = vector.load %arg3[%c0_3, %c0_4] : memref<128x128xf32, #tpu.memory_space<vmem>>, vector<128x128xf32>
    %cst = arith.constant dense<0.000000e+00> : vector<8x128xf32>
    %5 = tpu.matmul %3, %4, %cst {dimension_numbers = #tpu.dot_dimension_numbers<[1], [0], [0], [1], [0, 0, 1, 1], [], []>, precision = #tpu.contract_precision<fp32>} : vector<8x128xf32>, vector<128x128xf32>, vector<8x128xf32> -> vector<8x128xf32>
    %c0_5 = arith.constant 0 : index
    %c0_6 = arith.constant 0 : index
    %6 = vector.load %arg4[%c0_5, %c0_6] : memref<1x128xf32, #tpu.memory_space<vmem>>, vector<1x128xf32>
    %7 = vector.broadcast %6 : vector<1x128xf32> to vector<8x128xf32>
    %8 = arith.addf %5, %7 : vector<8x128xf32>
    %cst_7 = arith.constant 0.000000e+00 : f32
    %9 = vector.broadcast %cst_7 : f32 to vector<8x128xf32>
    %10 = arith.maximumf %8, %9 : vector<8x128xf32>
    %c0_8 = arith.constant 0 : index
    %c0_9 = arith.constant 0 : index
    %11 = vector.load %arg5[%c0_8, %c0_9] : memref<128x128xf32, #tpu.memory_space<vmem>>, vector<128x128xf32>
    %cst_10 = arith.constant dense<0.000000e+00> : vector<8x128xf32>
    %12 = tpu.matmul %10, %11, %cst_10 {dimension_numbers = #tpu.dot_dimension_numbers<[1], [0], [0], [1], [0, 0, 1, 1], [], []>, precision = #tpu.contract_precision<fp32>} : vector<8x128xf32>, vector<128x128xf32>, vector<8x128xf32> -> vector<8x128xf32>
    %c0_11 = arith.constant 0 : index
    %c0_12 = arith.constant 0 : index
    %13 = vector.load %arg6[%c0_11, %c0_12] : memref<1x128xf32, #tpu.memory_space<vmem>>, vector<1x128xf32>
    %14 = vector.broadcast %13 : vector<1x128xf32> to vector<8x128xf32>
    %15 = arith.addf %12, %14 : vector<8x128xf32>
    %cst_13 = arith.constant 0.000000e+00 : f32
    %16 = vector.broadcast %cst_13 : f32 to vector<8x128xf32>
    %17 = arith.maximumf %15, %16 : vector<8x128xf32>
    %c0_14 = arith.constant 0 : index
    %c0_15 = arith.constant 0 : index
    %18 = vector.load %arg7[%c0_14, %c0_15] : memref<128x128xf32, #tpu.memory_space<vmem>>, vector<128x128xf32>
    %cst_16 = arith.constant dense<0.000000e+00> : vector<8x128xf32>
    %19 = tpu.matmul %17, %18, %cst_16 {dimension_numbers = #tpu.dot_dimension_numbers<[1], [0], [0], [1], [0, 0, 1, 1], [], []>, precision = #tpu.contract_precision<fp32>} : vector<8x128xf32>, vector<128x128xf32>, vector<8x128xf32> -> vector<8x128xf32>
    %c0_17 = arith.constant 0 : index
    %c0_18 = arith.constant 0 : index
    %20 = vector.load %arg8[%c0_17, %c0_18] : memref<1x128xf32, #tpu.memory_space<vmem>>, vector<1x128xf32>
    %21 = vector.broadcast %20 : vector<1x128xf32> to vector<8x128xf32>
    %22 = arith.addf %19, %21 : vector<8x128xf32>
    %cst_19 = arith.constant 0.000000e+00 : f32
    %23 = vector.broadcast %cst_19 : f32 to vector<8x128xf32>
    %24 = arith.maximumf %22, %23 : vector<8x128xf32>
    %c0_20 = arith.constant 0 : index
    %c0_21 = arith.constant 0 : index
    %25 = vector.load %arg9[%c0_20, %c0_21] : memref<128x128xf32, #tpu.memory_space<vmem>>, vector<128x128xf32>
    %cst_22 = arith.constant dense<0.000000e+00> : vector<8x128xf32>
    %26 = tpu.matmul %24, %25, %cst_22 {dimension_numbers = #tpu.dot_dimension_numbers<[1], [0], [0], [1], [0, 0, 1, 1], [], []>, precision = #tpu.contract_precision<fp32>} : vector<8x128xf32>, vector<128x128xf32>, vector<8x128xf32> -> vector<8x128xf32>
    %c0_23 = arith.constant 0 : index
    %c0_24 = arith.constant 0 : index
    %27 = vector.load %arg10[%c0_23, %c0_24] : memref<1x128xf32, #tpu.memory_space<vmem>>, vector<1x128xf32>
    %28 = vector.broadcast %27 : vector<1x128xf32> to vector<8x128xf32>
    %29 = arith.addf %26, %28 : vector<8x128xf32>
    %cst_25 = arith.constant 0.000000e+00 : f32
    %30 = vector.broadcast %cst_25 : f32 to vector<8x128xf32>
    %31 = arith.maximumf %29, %30 : vector<8x128xf32>
    %c0_26 = arith.constant 0 : index
    %c0_27 = arith.constant 0 : index
    %32 = vector.load %arg11[%c0_26, %c0_27] : memref<128x128xf32, #tpu.memory_space<vmem>>, vector<128x128xf32>
    %cst_28 = arith.constant dense<0.000000e+00> : vector<8x128xf32>
    %33 = tpu.matmul %31, %32, %cst_28 {dimension_numbers = #tpu.dot_dimension_numbers<[1], [0], [0], [1], [0, 0, 1, 1], [], []>, precision = #tpu.contract_precision<fp32>} : vector<8x128xf32>, vector<128x128xf32>, vector<8x128xf32> -> vector<8x128xf32>
    %c0_29 = arith.constant 0 : index
    %c0_30 = arith.constant 0 : index
    %34 = vector.load %arg12[%c0_29, %c0_30] : memref<1x128xf32, #tpu.memory_space<vmem>>, vector<1x128xf32>
    %35 = vector.broadcast %34 : vector<1x128xf32> to vector<8x128xf32>
    %36 = arith.addf %33, %35 : vector<8x128xf32>
    %cst_31 = arith.constant 0.000000e+00 : f32
    %37 = vector.broadcast %cst_31 : f32 to vector<8x128xf32>
    %38 = arith.maximumf %36, %37 : vector<8x128xf32>
    %c0_32 = arith.constant 0 : index
    %c0_33 = arith.constant 0 : index
    %39 = vector.load %arg13[%c0_32, %c0_33] : memref<128x128xf32, #tpu.memory_space<vmem>>, vector<128x128xf32>
    %cst_34 = arith.constant dense<0.000000e+00> : vector<8x128xf32>
    %40 = tpu.matmul %38, %39, %cst_34 {dimension_numbers = #tpu.dot_dimension_numbers<[1], [0], [0], [1], [0, 0, 1, 1], [], []>, precision = #tpu.contract_precision<fp32>} : vector<8x128xf32>, vector<128x128xf32>, vector<8x128xf32> -> vector<8x128xf32>
    %c0_35 = arith.constant 0 : index
    %c0_36 = arith.constant 0 : index
    %41 = vector.load %arg14[%c0_35, %c0_36] : memref<1x128xf32, #tpu.memory_space<vmem>>, vector<1x128xf32>
    %42 = vector.broadcast %41 : vector<1x128xf32> to vector<8x128xf32>
    %43 = arith.addf %40, %42 : vector<8x128xf32>
    %c0_37 = arith.constant 0 : index
    %c0_38 = arith.constant 0 : index
    %44 = vector.load %arg2[%c0_37, %c0_38] : memref<1x128xf32, #tpu.memory_space<vmem>>, vector<1x128xf32>
    %45 = vector.broadcast %44 : vector<1x128xf32> to vector<8x128xf32>
    %46 = arith.addf %43, %45 : vector<8x128xf32>
    %c0_39 = arith.constant 0 : index
    %c0_40 = arith.constant 0 : index
    %47 = vector.load %arg15[%c0_39, %c0_40] : memref<8x128xf32, #tpu.memory_space<vmem>>, vector<8x128xf32>
    tpu.vector_store %arg15[%c0_39, %c0_40], %46 {strides = array<i32>} : memref<8x128xf32, #tpu.memory_space<vmem>>, vector<8x128xf32>,
    return
  }
  func.func @transform_0(%arg0: i32) -> (i32, i32) {
    %c0_i32 = arith.constant 0 : i32
    %c0_i32_0 = arith.constant 0 : i32
    return %arg0, %c0_i32 : i32, i32
  }
  func.func @transform_1(%arg0: i32) -> (i32, i32) {
    %c0_i32 = arith.constant 0 : i32
    %c0_i32_0 = arith.constant 0 : i32
    %c0_i32_1 = arith.constant 0 : i32
    return %c0_i32, %c0_i32_0 : i32, i32
  }
  func.func @transform_2(%arg0: i32) -> (i32, i32) {
    %c0_i32 = arith.constant 0 : i32
    %c0_i32_0 = arith.constant 0 : i32
    %c0_i32_1 = arith.constant 0 : i32
    return %c0_i32, %c0_i32_0 : i32, i32
  }
  func.func @transform_3(%arg0: i32) -> (i32, i32) {
    %c0_i32 = arith.constant 0 : i32
    %c0_i32_0 = arith.constant 0 : i32
    %c0_i32_1 = arith.constant 0 : i32
    return %c0_i32, %c0_i32_0 : i32, i32
  }
  func.func @transform_4(%arg0: i32) -> (i32, i32) {
    %c0_i32 = arith.constant 0 : i32
    %c0_i32_0 = arith.constant 0 : i32
    %c0_i32_1 = arith.constant 0 : i32
    return %c0_i32, %c0_i32_0 : i32, i32
  }
  func.func @transform_5(%arg0: i32) -> (i32, i32) {
    %c0_i32 = arith.constant 0 : i32
    %c0_i32_0 = arith.constant 0 : i32
    %c0_i32_1 = arith.constant 0 : i32
    return %c0_i32, %c0_i32_0 : i32, i32
  }
  func.func @transform_6(%arg0: i32) -> (i32, i32) {
    %c0_i32 = arith.constant 0 : i32
    %c0_i32_0 = arith.constant 0 : i32
    %c0_i32_1 = arith.constant 0 : i32
    return %c0_i32, %c0_i32_0 : i32, i32
  }
  func.func @transform_7(%arg0: i32) -> (i32, i32) {
    %c0_i32 = arith.constant 0 : i32
    %c0_i32_0 = arith.constant 0 : i32
    %c0_i32_1 = arith.constant 0 : i32
    return %c0_i32, %c0_i32_0 : i32, i32
  }
  func.func @transform_8(%arg0: i32) -> (i32, i32) {
    %c0_i32 = arith.constant 0 : i32
    %c0_i32_0 = arith.constant 0 : i32
    %c0_i32_1 = arith.constant 0 : i32
    return %c0_i32, %c0_i32_0 : i32, i32
  }
  func.func @transform_9(%arg0: i32) -> (i32, i32) {
    %c0_i32 = arith.constant 0 : i32
    %c0_i32_0 = arith.constant 0 : i32
    %c0_i32_1 = arith.constant 0 : i32
    return %c0_i32, %c0_i32_0 : i32, i32
  }
  func.func @transform_10(%arg0: i32) -> (i32, i32) {
    %c0_i32 = arith.constant 0 : i32
    %c0_i32_0 = arith.constant 0 : i32
    %c0_i32_1 = arith.constant 0 : i32
    return %c0_i32, %c0_i32_0 : i32, i32
  }
  func.func @transform_11(%arg0: i32) -> (i32, i32) {
    %c0_i32 = arith.constant 0 : i32
    %c0_i32_0 = arith.constant 0 : i32
    %c0_i32_1 = arith.constant 0 : i32
    return %c0_i32, %c0_i32_0 : i32, i32
  }
  func.func @transform_12(%arg0: i32) -> (i32, i32) {
    %c0_i32 = arith.constant 0 : i32
    %c0_i32_0 = arith.constant 0 : i32
    %c0_i32_1 = arith.constant 0 : i32
    return %c0_i32, %c0_i32_0 : i32, i32
  }
  func.func @transform_13(%arg0: i32) -> (i32, i32) {
    %c0_i32 = arith.constant 0 : i32
    %c0_i32_0 = arith.constant 0 : i32
    %c0_i32_1 = arith.constant 0 : i32
    return %c0_i32, %c0_i32_0 : i32, i32
  }
  func.func @transform_14(%arg0: i32) -> (i32, i32) {
    %c0_i32 = arith.constant 0 : i32
    %c0_i32_0 = arith.constant 0 : i32
    return %arg0, %c0_i32 : i32, i32
  }
}

</mosaic_0001>

<llo_original>
// kernel: mlp_forward.1
$region0: #{mlp_forward.1}
  #allocation0 [shape = 'u32[]', space=smem, size = 0x4, offset = 0x4, fixed_abs, tag = 'smem constant byte address 0x4 - core index']
  #allocation1 [shape = 'u32[72,128]{1,0:T(1,128)}', space=vmem, size = 0x9000, scoped, tag = 'internal scratch']
  %s0 = inlined_call_operand.vmem [shape: f32[8,128], index: 0, kind: input, shape index: {}]
  %s1 = inlined_call_operand.vmem [shape: f32[1,128], index: 1, kind: input, shape index: {}]
  %s2 = inlined_call_operand.hbm [shape: f32[128,128], index: 2, kind: input, shape index: {}]
  %s3 = inlined_call_operand.vmem [shape: f32[1,128], index: 3, kind: input, shape index: {}]
  %s4 = inlined_call_operand.hbm [shape: f32[128,128], index: 4, kind: input, shape index: {}]
  %s5 = inlined_call_operand.vmem [shape: f32[1,128], index: 5, kind: input, shape index: {}]
  %s6 = inlined_call_operand.hbm [shape: f32[128,128], index: 6, kind: input, shape index: {}]
  %s7 = inlined_call_operand.vmem [shape: f32[1,128], index: 7, kind: input, shape index: {}]
  %s8 = inlined_call_operand.hbm [shape: f32[128,128], index: 8, kind: input, shape index: {}]
  %s9 = inlined_call_operand.vmem [shape: f32[1,128], index: 9, kind: input, shape index: {}]
  %s10 = inlined_call_operand.hbm [shape: f32[128,128], index: 10, kind: input, shape index: {}]
  %s11 = inlined_call_operand.vmem [shape: f32[1,128], index: 11, kind: input, shape index: {}]
  %s12 = inlined_call_operand.hbm [shape: f32[128,128], index: 12, kind: input, shape index: {}]
  %s13 = inlined_call_operand.vmem [shape: f32[1,128], index: 13, kind: input, shape index: {}]
  %s14 = inlined_call_operand.vmem [shape: f32[8,128], index: 14, kind: output, shape index: {}]
  %s15 = sld [smem:[#allocation0]]
  $region90: #{mlp_forward.1} parent=0
    _
  %s17 = ssub.s32 1, %s15
  %s18 = scalar_select 0, %s17, %s15
  $region1: #{mlp_forward.1} parent=0
    #allocation2 [shape = 'u8[65536]{0}', space=vmem, size = 0x10000, scoped, tag = 'input window, operand 2, single buffered']
    #allocation3 [shape = 's32[1]{0}', space=sflag, size = 0x4, scoped, tag = 'scoped memory for mlp_forward.1']
    #allocation4 [shape = 'u8[65536]{0}', space=vmem, size = 0x10000, scoped, tag = 'input window, operand 4, single buffered']
    #allocation5 [shape = 's32[1]{0}', space=sflag, size = 0x4, scoped, tag = 'scoped memory for mlp_forward.1']
    #allocation6 [shape = 'u8[65536]{0}', space=vmem, size = 0x10000, scoped, tag = 'input window, operand 6, single buffered']
    #allocation7 [shape = 'u8[65536]{0}', space=vmem, size = 0x10000, scoped, tag = 'input window, operand 8, single buffered']
    #allocation8 [shape = 's32[1]{0}', space=sflag, size = 0x4, scoped, tag = 'scoped memory for mlp_forward.1']
    #allocation9 [shape = 'u8[65536]{0}', space=vmem, size = 0x10000, scoped, tag = 'input window, operand 10, single buffered']
    #allocation10 [shape = 'u8[65536]{0}', space=vmem, size = 0x10000, scoped, tag = 'input window, operand 12, single buffered']
    #allocation11 [shape = 's32[1]{0}', space=sflag, size = 0x4, scoped, tag = 'scoped memory for mlp_forward.1']
    %19 = vsyncpa [#allocation3], 0
    %20 = vsyncpa [#allocation5], 0
    %21 = vsyncpa [#allocation8], 0
    %22 = vsyncpa [#allocation11], 0
    // Predicated region
    $region2: #{mlp_forward.1} parent=1 // pred_check
      _
    $region3: #{mlp_forward.1} parent=1 // pred_check_branch
      %24 = sbr.rel (0) target = $region5
    $region4: #{mlp_forward.1} parent=1 // pred_region
      _
    $region5: #{mlp_forward.1} parent=1 // pred_fallthru
      _
    // Predicated region
    $region6: #{mlp_forward.1} parent=1 // pred_check
      _
    $region7: #{mlp_forward.1} parent=1 // pred_check_branch
      %26 = sbr.rel (0) target = $region9
    $region8: #{mlp_forward.1} parent=1 // pred_region
      _
    $region9: #{mlp_forward.1} parent=1 // pred_fallthru
      _
    // Predicated region
    $region10: #{mlp_forward.1} parent=1 // pred_check
      _
    $region11: #{mlp_forward.1} parent=1 // pred_check_branch
      %28 = sbr.rel (0) target = $region13
    $region12: #{mlp_forward.1} parent=1 // pred_region
      %30 = vsyncadd [#allocation3], 0
      %s31 = sshll.u32 %s2, 4
      %s32 = int_to_ptr.hbm [resolvable:$true] %s31
      %s33 = sshll.u32 [#allocation2], 4
      %s34 = int_to_ptr.vmem [resolvable:$true] %s33
      %39 = dma.hbm_to_vmem [thread:$0]  %s32, 2048, %s34, [#allocation3], 128, 128, 8
    $region13: #{mlp_forward.1} parent=1 // pred_fallthru
      _
    // Predicated region
    $region14: #{mlp_forward.1} parent=1 // pred_check
      _
    $region15: #{mlp_forward.1} parent=1 // pred_check_branch
      %41 = sbr.rel (0) target = $region17
    $region16: #{mlp_forward.1} parent=1 // pred_region
      _
    $region17: #{mlp_forward.1} parent=1 // pred_fallthru
      _
    // Predicated region
    $region18: #{mlp_forward.1} parent=1 // pred_check
      _
    $region19: #{mlp_forward.1} parent=1 // pred_check_branch
      %43 = sbr.rel (0) target = $region21
    $region20: #{mlp_forward.1} parent=1 // pred_region
      %45 = vsyncadd [#allocation5], 0
      %s46 = sshll.u32 %s4, 4
      %s47 = int_to_ptr.hbm [resolvable:$true] %s46
      %s48 = sshll.u32 [#allocation4], 4
      %s49 = int_to_ptr.vmem [resolvable:$true] %s48
      %54 = dma.hbm_to_vmem [thread:$0]  %s47, 2048, %s49, [#allocation5], 128, 128, 8
    $region21: #{mlp_forward.1} parent=1 // pred_fallthru
      _
    // Predicated region
    $region22: #{mlp_forward.1} parent=1 // pred_check
      _
    $region23: #{mlp_forward.1} parent=1 // pred_check_branch
      %56 = sbr.rel (0) target = $region25
    $region24: #{mlp_forward.1} parent=1 // pred_region
      _
    $region25: #{mlp_forward.1} parent=1 // pred_fallthru
      _
    // Predicated region
    $region26: #{mlp_forward.1} parent=1 // pred_check
      _
    $region27: #{mlp_forward.1} parent=1 // pred_check_branch
      %58 = sbr.rel (0) target = $region29
    $region28: #{mlp_forward.1} parent=1 // pred_region
      %60 = vsyncadd [#allocation5], 0
      %s61 = sshll.u32 %s6, 4
      %s62 = int_to_ptr.hbm [resolvable:$true] %s61
      %s63 = sshll.u32 [#allocation6], 4
      %s64 = int_to_ptr.vmem [resolvable:$true] %s63
      %69 = dma.hbm_to_vmem [thread:$0]  %s62, 2048, %s64, [#allocation5], 128, 128, 8
    $region29: #{mlp_forward.1} parent=1 // pred_fallthru
      _
    // Predicated region
    $region30: #{mlp_forward.1} parent=1 // pred_check
      _
    $region31: #{mlp_forward.1} parent=1 // pred_check_branch
      %71 = sbr.rel (0) target = $region33
    $region32: #{mlp_forward.1} parent=1 // pred_region
      _
    $region33: #{mlp_forward.1} parent=1 // pred_fallthru
      _
    // Predicated region
    $region34: #{mlp_forward.1} parent=1 // pred_check
      _
    $region35: #{mlp_forward.1} parent=1 // pred_check_branch
      %73 = sbr.rel (0) target = $region37
    $region36: #{mlp_forward.1} parent=1 // pred_region
      %75 = vsyncadd [#allocation8], 0
      %s76 = sshll.u32 %s8, 4
      %s77 = int_to_ptr.hbm [resolvable:$true] %s76
      %s78 = sshll.u32 [#allocation7], 4
      %s79 = int_to_ptr.vmem [resolvable:$true] %s78
      %84 = dma.hbm_to_vmem [thread:$0]  %s77, 2048, %s79, [#allocation8], 128, 128, 8
    $region37: #{mlp_forward.1} parent=1 // pred_fallthru
      _
    // Predicated region
    $region38: #{mlp_forward.1} parent=1 // pred_check
      _
    $region39: #{mlp_forward.1} parent=1 // pred_check_branch
      %86 = sbr.rel (0) target = $region41
    $region40: #{mlp_forward.1} parent=1 // pred_region
      _
    $region41: #{mlp_forward.1} parent=1 // pred_fallthru
      _
    // Predicated region
    $region42: #{mlp_forward.1} parent=1 // pred_check
      _
    $region43: #{mlp_forward.1} parent=1 // pred_check_branch
      %88 = sbr.rel (0) target = $region45
    $region44: #{mlp_forward.1} parent=1 // pred_region
      %90 = vsyncadd [#allocation8], 0
      %s91 = sshll.u32 %s10, 4
      %s92 = int_to_ptr.hbm [resolvable:$true] %s91
      %s93 = sshll.u32 [#allocation9], 4
      %s94 = int_to_ptr.vmem [resolvable:$true] %s93
      %99 = dma.hbm_to_vmem [thread:$0]  %s92, 2048, %s94, [#allocation8], 128, 128, 8
    $region45: #{mlp_forward.1} parent=1 // pred_fallthru
      _
    // Predicated region
    $region46: #{mlp_forward.1} parent=1 // pred_check
      _
    $region47: #{mlp_forward.1} parent=1 // pred_check_branch
      %101 = sbr.rel (0) target = $region49
    $region48: #{mlp_forward.1} parent=1 // pred_region
      _
    $region49: #{mlp_forward.1} parent=1 // pred_fallthru
      _
    // Predicated region
    $region50: #{mlp_forward.1} parent=1 // pred_check
      _
    $region51: #{mlp_forward.1} parent=1 // pred_check_branch
      %103 = sbr.rel (0) target = $region53
    $region52: #{mlp_forward.1} parent=1 // pred_region
      %105 = vsyncadd [#allocation11], 0
      %s106 = sshll.u32 %s12, 4
      %s107 = int_to_ptr.hbm [resolvable:$true] %s106
      %s108 = sshll.u32 [#allocation10], 4
      %s109 = int_to_ptr.vmem [resolvable:$true] %s108
      %114 = dma.hbm_to_vmem [thread:$0]  %s107, 2048, %s109, [#allocation11], 128, 128, 8
    $region53: #{mlp_forward.1} parent=1 // pred_fallthru
      _
    // Predicated region
    $region54: #{mlp_forward.1} parent=1 // pred_check
      _
    $region55: #{mlp_forward.1} parent=1 // pred_check_branch
      %116 = sbr.rel (0) target = $region57
    $region56: #{mlp_forward.1} parent=1 // pred_region
      _
    $region57: #{mlp_forward.1} parent=1 // pred_fallthru
      _
    // Predicated region
    $region58: #{mlp_forward.1} parent=1 // pred_check
      _
    $region59: #{mlp_forward.1} parent=1 // pred_check_branch
      %118 = sbr.rel (0) target = $region61
    $region60: #{mlp_forward.1} parent=1 // pred_region
      %120 = dma.done [#allocation3], 2048
    $region61: #{mlp_forward.1} parent=1 // pred_fallthru
      _
    // Predicated region
    $region62: #{mlp_forward.1} parent=1 // pred_check
      _
    $region63: #{mlp_forward.1} parent=1 // pred_check_branch
      %122 = sbr.rel (0) target = $region65
    $region64: #{mlp_forward.1} parent=1 // pred_region
      %124 = dma.done [#allocation5], 2048
    $region65: #{mlp_forward.1} parent=1 // pred_fallthru
      _
    // Predicated region
    $region66: #{mlp_forward.1} parent=1 // pred_check
      _
    $region67: #{mlp_forward.1} parent=1 // pred_check_branch
      %126 = sbr.rel (0) target = $region69
    $region68: #{mlp_forward.1} parent=1 // pred_region
      %128 = dma.done [#allocation5], 2048
    $region69: #{mlp_forward.1} parent=1 // pred_fallthru
      _
    // Predicated region
    $region70: #{mlp_forward.1} parent=1 // pred_check
      _
    $region71: #{mlp_forward.1} parent=1 // pred_check_branch
      %130 = sbr.rel (0) target = $region73
    $region72: #{mlp_forward.1} parent=1 // pred_region
      %132 = dma.done [#allocation8], 2048
    $region73: #{mlp_forward.1} parent=1 // pred_fallthru
      _
    // Predicated region
    $region74: #{mlp_forward.1} parent=1 // pred_check
      _
    $region75: #{mlp_forward.1} parent=1 // pred_check_branch
      %134 = sbr.rel (0) target = $region77
    $region76: #{mlp_forward.1} parent=1 // pred_region
      %136 = dma.done [#allocation8], 2048
    $region77: #{mlp_forward.1} parent=1 // pred_fallthru
      _
    // Predicated region
    $region78: #{mlp_forward.1} parent=1 // pred_check
      _
    $region79: #{mlp_forward.1} parent=1 // pred_check_branch
      %138 = sbr.rel (0) target = $region81
    $region80: #{mlp_forward.1} parent=1 // pred_region
      %140 = dma.done [#allocation11], 2048
    $region81: #{mlp_forward.1} parent=1 // pred_fallthru
      _
    %v141 = vld [vmem:[%s0] sm:$0xff]
    %v142 = vld [vmem:[%s1] sm:$0x1]
    %v144 = vperm.slane %v142, 0
    %v146 = vsub.f32 %v141, %v144
    %v147 = vld [vmem:[#allocation2] sm:$0xff]
    %v148 = vld [vmem:[#allocation2 + $0x8] sm:$0xff]
    %v149 = vld [vmem:[#allocation2 + $0x10] sm:$0xff]
    %v150 = vld [vmem:[#allocation2 + $0x18] sm:$0xff]
    %v151 = vld [vmem:[#allocation2 + $0x20] sm:$0xff]
    %v152 = vld [vmem:[#allocation2 + $0x28] sm:$0xff]
    %v153 = vld [vmem:[#allocation2 + $0x30] sm:$0xff]
    %v154 = vld [vmem:[#allocation2 + $0x38] sm:$0xff]
    %v155 = vld [vmem:[#allocation2 + $0x40] sm:$0xff]
    %v156 = vld [vmem:[#allocation2 + $0x48] sm:$0xff]
    %v157 = vld [vmem:[#allocation2 + $0x50] sm:$0xff]
    %v158 = vld [vmem:[#allocation2 + $0x58] sm:$0xff]
    %v159 = vld [vmem:[#allocation2 + $0x60] sm:$0xff]
    %v160 = vld [vmem:[#allocation2 + $0x68] sm:$0xff]
    %v161 = vld [vmem:[#allocation2 + $0x70] sm:$0xff]
    %v162 = vld [vmem:[#allocation2 + $0x78] sm:$0xff]
    %v163 = vld [vmem:[%s3] sm:$0x1]
    %v165 = vperm.slane %v163, 0
    %v167 = vand.u32 %v162, 4294901760
    %168 = vmatpush.msra.mxu0 %v167
    %v169 = vand.u32 %v161, 4294901760
    %170 = vmatpush.msra.mxu0 %v169
    %v171 = vand.u32 %v160, 4294901760
    %172 = vmatpush.msra.mxu0 %v171
    %v173 = vand.u32 %v159, 4294901760
    %174 = vmatpush.msra.mxu0 %v173
    %v175 = vand.u32 %v158, 4294901760
    %176 = vmatpush.msra.mxu0 %v175
    %v177 = vand.u32 %v157, 4294901760
    %178 = vmatpush.msra.mxu0 %v177
    %v179 = vand.u32 %v156, 4294901760
    %180 = vmatpush.msra.mxu0 %v179
    %v181 = vand.u32 %v155, 4294901760
    %182 = vmatpush.msra.mxu0 %v181
    %v183 = vand.u32 %v154, 4294901760
    %184 = vmatpush.msra.mxu0 %v183
    %v185 = vand.u32 %v153, 4294901760
    %186 = vmatpush.msra.mxu0 %v185
    %v187 = vand.u32 %v152, 4294901760
    %188 = vmatpush.msra.mxu0 %v187
    %v189 = vand.u32 %v151, 4294901760
    %190 = vmatpush.msra.mxu0 %v189
    %v191 = vand.u32 %v150, 4294901760
    %192 = vmatpush.msra.mxu0 %v191
    %v193 = vand.u32 %v149, 4294901760
    %194 = vmatpush.msra.mxu0 %v193
    %v195 = vand.u32 %v148, 4294901760
    %196 = vmatpush.msra.mxu0 %v195
    %v197 = vand.u32 %v147, 4294901760
    %198 = vmatpush.msra.mxu0 %v197
    %v199 = vand.u32 %v146, 4294901760
    %v200 = vsub.f32 %v146, %v199
    %v201 = vand.u32 %v200, 4294901760
    %v202 = vsub.f32 %v200, %v201
    %v203 = vand.u32 %v202, 4294901760
    %204 = vmatmul.f32.gmra.mxu0 %v203
    %v205 = vpop.f32.mrf.mxu0
    %v206 = vadd.f32 %v165, %v205
    %207 = vdwg.mxu0
    %v208 = vand.u32 %v162, 4294901760
    %v209 = vsub.f32 %v162, %v208
    %v210 = vand.u32 %v209, 4294901760
    %v211 = vsub.f32 %v209, %v210
    %v212 = vand.u32 %v211, 4294901760
    %213 = vmatpush.msra.mxu0 %v212
    %v214 = vand.u32 %v161, 4294901760
    %v215 = vsub.f32 %v161, %v214
    %v216 = vand.u32 %v215, 4294901760
    %v217 = vsub.f32 %v215, %v216
    %v218 = vand.u32 %v217, 4294901760
    %219 = vmatpush.msra.mxu0 %v218
    %v220 = vand.u32 %v160, 4294901760
    %v221 = vsub.f32 %v160, %v220
    %v222 = vand.u32 %v221, 4294901760
    %v223 = vsub.f32 %v221, %v222
    %v224 = vand.u32 %v223, 4294901760
    %225 = vmatpush.msra.mxu0 %v224
    %v226 = vand.u32 %v159, 4294901760
    %v227 = vsub.f32 %v159, %v226
    %v228 = vand.u32 %v227, 4294901760
    %v229 = vsub.f32 %v227, %v228
    %v230 = vand.u32 %v229, 4294901760
    %231 = vmatpush.msra.mxu0 %v230
    %v232 = vand.u32 %v158, 4294901760
    %v233 = vsub.f32 %v158, %v232
    %v234 = vand.u32 %v233, 4294901760
    %v235 = vsub.f32 %v233, %v234
    %v236 = vand.u32 %v235, 4294901760
    %237 = vmatpush.msra.mxu0 %v236
    %v238 = vand.u32 %v157, 4294901760
    %v239 = vsub.f32 %v157, %v238
    %v240 = vand.u32 %v239, 4294901760
    %v241 = vsub.f32 %v239, %v240
    %v242 = vand.u32 %v241, 4294901760
    %243 = vmatpush.msra.mxu0 %v242
    %v244 = vand.u32 %v156, 4294901760
    %v245 = vsub.f32 %v156, %v244
    %v246 = vand.u32 %v245, 4294901760
    %v247 = vsub.f32 %v245, %v246
    %v248 = vand.u32 %v247, 4294901760
    %249 = vmatpush.msra.mxu0 %v248
    %v250 = vand.u32 %v155, 4294901760
    %v251 = vsub.f32 %v155, %v250
    %v252 = vand.u32 %v251, 4294901760
    %v253 = vsub.f32 %v251, %v252
    %v254 = vand.u32 %v253, 4294901760
    %255 = vmatpush.msra.mxu0 %v254
    %v256 = vand.u32 %v154, 4294901760
    %v257 = vsub.f32 %v154, %v256
    %v258 = vand.u32 %v257, 4294901760
    %v259 = vsub.f32 %v257, %v258
    %v260 = vand.u32 %v259, 4294901760
    %261 = vmatpush.msra.mxu0 %v260
    %v262 = vand.u32 %v153, 4294901760
    %v263 = vsub.f32 %v153, %v262
    %v264 = vand.u32 %v263, 4294901760
    %v265 = vsub.f32 %v263, %v264
    %v266 = vand.u32 %v265, 4294901760
    %267 = vmatpush.msra.mxu0 %v266
    %v268 = vand.u32 %v152, 4294901760
    %v269 = vsub.f32 %v152, %v268
    %v270 = vand.u32 %v269, 4294901760
    %v271 = vsub.f32 %v269, %v270
    %v272 = vand.u32 %v271, 4294901760
    %273 = vmatpush.msra.mxu0 %v272
    %v274 = vand.u32 %v151, 4294901760
    %v275 = vsub.f32 %v151, %v274
    %v276 = vand.u32 %v275, 4294901760
    %v277 = vsub.f32 %v275, %v276
    %v278 = vand.u32 %v277, 4294901760
    %279 = vmatpush.msra.mxu0 %v278
    %v280 = vand.u32 %v150, 4294901760
    %v281 = vsub.f32 %v150, %v280
    %v282 = vand.u32 %v281, 4294901760
    %v283 = vsub.f32 %v281, %v282
    %v284 = vand.u32 %v283, 4294901760
    %285 = vmatpush.msra.mxu0 %v284
    %v286 = vand.u32 %v149, 4294901760
    %v287 = vsub.f32 %v149, %v286
    %v288 = vand.u32 %v287, 4294901760
    %v289 = vsub.f32 %v287, %v288
    %v290 = vand.u32 %v289, 4294901760
    %291 = vmatpush.msra.mxu0 %v290
    %v292 = vand.u32 %v148, 4294901760
    %v293 = vsub.f32 %v148, %v292
    %v294 = vand.u32 %v293, 4294901760
    %v295 = vsub.f32 %v293, %v294
    %v296 = vand.u32 %v295, 4294901760
    %297 = vmatpush.msra.mxu0 %v296
    %v298 = vand.u32 %v147, 4294901760
    %v299 = vsub.f32 %v147, %v298
    %v300 = vand.u32 %v299, 4294901760
    %v301 = vsub.f32 %v299, %v300
    %v302 = vand.u32 %v301, 4294901760
    %303 = vmatpush.msra.mxu0 %v302
    %v304 = vand.u32 %v146, 4294901760
    %305 = vmatmul.f32.gmra.mxu0 %v304
    %v306 = vpop.f32.mrf.mxu0
    %v307 = vadd.f32 %v206, %v306
    %308 = vdwg.mxu0
    %v309 = vand.u32 %v162, 4294901760
    %v310 = vsub.f32 %v162, %v309
    %311 = vmatpush.msra.mxu0 %v310
    %v312 = vand.u32 %v161, 4294901760
    %v313 = vsub.f32 %v161, %v312
    %314 = vmatpush.msra.mxu0 %v313
    %v315 = vand.u32 %v160, 4294901760
    %v316 = vsub.f32 %v160, %v315
    %317 = vmatpush.msra.mxu0 %v316
    %v318 = vand.u32 %v159, 4294901760
    %v319 = vsub.f32 %v159, %v318
    %320 = vmatpush.msra.mxu0 %v319
    %v321 = vand.u32 %v158, 4294901760
    %v322 = vsub.f32 %v158, %v321
    %323 = vmatpush.msra.mxu0 %v322
    %v324 = vand.u32 %v157, 4294901760
    %v325 = vsub.f32 %v157, %v324
    %326 = vmatpush.msra.mxu0 %v325
    %v327 = vand.u32 %v156, 4294901760
    %v328 = vsub.f32 %v156, %v327
    %329 = vmatpush.msra.mxu0 %v328
    %v330 = vand.u32 %v155, 4294901760
    %v331 = vsub.f32 %v155, %v330
    %332 = vmatpush.msra.mxu0 %v331
    %v333 = vand.u32 %v154, 4294901760
    %v334 = vsub.f32 %v154, %v333
    %335 = vmatpush.msra.mxu0 %v334
    %v336 = vand.u32 %v153, 4294901760
    %v337 = vsub.f32 %v153, %v336
    %338 = vmatpush.msra.mxu0 %v337
    %v339 = vand.u32 %v152, 4294901760
    %v340 = vsub.f32 %v152, %v339
    %341 = vmatpush.msra.mxu0 %v340
    %v342 = vand.u32 %v151, 4294901760
    %v343 = vsub.f32 %v151, %v342
    %344 = vmatpush.msra.mxu0 %v343
    %v345 = vand.u32 %v150, 4294901760
    %v346 = vsub.f32 %v150, %v345
    %347 = vmatpush.msra.mxu0 %v346
    %v348 = vand.u32 %v149, 4294901760
    %v349 = vsub.f32 %v149, %v348
    %350 = vmatpush.msra.mxu0 %v349
    %v351 = vand.u32 %v148, 4294901760
    %v352 = vsub.f32 %v148, %v351
    %353 = vmatpush.msra.mxu0 %v352
    %v354 = vand.u32 %v147, 4294901760
    %v355 = vsub.f32 %v147, %v354
    %356 = vmatpush.msra.mxu0 %v355
    %v357 = vand.u32 %v146, 4294901760
    %v358 = vsub.f32 %v146, %v357
    %359 = vmatmul.f32.gmra.mxu0 %v358
    %v360 = vpop.f32.mrf.mxu0
    %v361 = vadd.f32 %v307, %v360
    %362 = vdwg.mxu0
    %v363 = vand.u32 %v162, 4294901760
    %364 = vmatpush.msra.mxu0 %v363
    %v365 = vand.u32 %v161, 4294901760
    %366 = vmatpush.msra.mxu0 %v365
    %v367 = vand.u32 %v160, 4294901760
    %368 = vmatpush.msra.mxu0 %v367
    %v369 = vand.u32 %v159, 4294901760
    %370 = vmatpush.msra.mxu0 %v369
    %v371 = vand.u32 %v158, 4294901760
    %372 = vmatpush.msra.mxu0 %v371
    %v373 = vand.u32 %v157, 4294901760
    %374 = vmatpush.msra.mxu0 %v373
    %v375 = vand.u32 %v156, 4294901760
    %376 = vmatpush.msra.mxu0 %v375
    %v377 = vand.u32 %v155, 4294901760
    %378 = vmatpush.msra.mxu0 %v377
    %v379 = vand.u32 %v154, 4294901760
    %380 = vmatpush.msra.mxu0 %v379
    %v381 = vand.u32 %v153, 4294901760
    %382 = vmatpush.msra.mxu0 %v381
    %v383 = vand.u32 %v152, 4294901760
    %384 = vmatpush.msra.mxu0 %v383
    %v385 = vand.u32 %v151, 4294901760
    %386 = vmatpush.msra.mxu0 %v385
    %v387 = vand.u32 %v150, 4294901760
    %388 = vmatpush.msra.mxu0 %v387
    %v389 = vand.u32 %v149, 4294901760
    %390 = vmatpush.msra.mxu0 %v389
    %v391 = vand.u32 %v148, 4294901760
    %392 = vmatpush.msra.mxu0 %v391
    %v393 = vand.u32 %v147, 4294901760
    %394 = vmatpush.msra.mxu0 %v393
    %v395 = vand.u32 %v146, 4294901760
    %v396 = vsub.f32 %v146, %v395
    %v397 = vand.u32 %v396, 4294901760
    %398 = vmatmul.f32.gmra.mxu0 %v397
    %v399 = vpop.f32.mrf.mxu0
    %v400 = vadd.f32 %v361, %v399
    %401 = vdwg.mxu0
    %v402 = vand.u32 %v162, 4294901760
    %v403 = vsub.f32 %v162, %v402
    %v404 = vand.u32 %v403, 4294901760
    %405 = vmatpush.msra.mxu0 %v404
    %v406 = vand.u32 %v161, 4294901760
    %v407 = vsub.f32 %v161, %v406
    %v408 = vand.u32 %v407, 4294901760
    %409 = vmatpush.msra.mxu0 %v408
    %v410 = vand.u32 %v160, 4294901760
    %v411 = vsub.f32 %v160, %v410
    %v412 = vand.u32 %v411, 4294901760
    %413 = vmatpush.msra.mxu0 %v412
    %v414 = vand.u32 %v159, 4294901760
    %v415 = vsub.f32 %v159, %v414
    %v416 = vand.u32 %v415, 4294901760
    %417 = vmatpush.msra.mxu0 %v416
    %v418 = vand.u32 %v158, 4294901760
    %v419 = vsub.f32 %v158, %v418
    %v420 = vand.u32 %v419, 4294901760
    %421 = vmatpush.msra.mxu0 %v420
    %v422 = vand.u32 %v157, 4294901760
    %v423 = vsub.f32 %v157, %v422
    %v424 = vand.u32 %v423, 4294901760
    %425 = vmatpush.msra.mxu0 %v424
    %v426 = vand.u32 %v156, 4294901760
    %v427 = vsub.f32 %v156, %v426
    %v428 = vand.u32 %v427, 4294901760
    %429 = vmatpush.msra.mxu0 %v428
    %v430 = vand.u32 %v155, 4294901760
    %v431 = vsub.f32 %v155, %v430
    %v432 = vand.u32 %v431, 4294901760
    %433 = vmatpush.msra.mxu0 %v432
    %v434 = vand.u32 %v154, 4294901760
    %v435 = vsub.f32 %v154, %v434
    %v436 = vand.u32 %v435, 4294901760
    %437 = vmatpush.msra.mxu0 %v436
    %v438 = vand.u32 %v153, 4294901760
    %v439 = vsub.f32 %v153, %v438
    %v440 = vand.u32 %v439, 4294901760
    %441 = vmatpush.msra.mxu0 %v440
    %v442 = vand.u32 %v152, 4294901760
    %v443 = vsub.f32 %v152, %v442
    %v444 = vand.u32 %v443, 4294901760
    %445 = vmatpush.msra.mxu0 %v444
    %v446 = vand.u32 %v151, 4294901760
    %v447 = vsub.f32 %v151, %v446
    %v448 = vand.u32 %v447, 4294901760
    %449 = vmatpush.msra.mxu0 %v448
    %v450 = vand.u32 %v150, 4294901760
    %v451 = vsub.f32 %v150, %v450
    %v452 = vand.u32 %v451, 4294901760
    %453 = vmatpush.msra.mxu0 %v452
    %v454 = vand.u32 %v149, 4294901760
    %v455 = vsub.f32 %v149, %v454
    %v456 = vand.u32 %v455, 4294901760
    %457 = vmatpush.msra.mxu0 %v456
    %v458 = vand.u32 %v148, 4294901760
    %v459 = vsub.f32 %v148, %v458
    %v460 = vand.u32 %v459, 4294901760
    %461 = vmatpush.msra.mxu0 %v460
    %v462 = vand.u32 %v147, 4294901760
    %v463 = vsub.f32 %v147, %v462
    %v464 = vand.u32 %v463, 4294901760
    %465 = vmatpush.msra.mxu0 %v464
    %v466 = vand.u32 %v146, 4294901760
    %467 = vmatmul.f32.gmra.mxu0 %v466
    %v468 = vpop.f32.mrf.mxu0
    %v469 = vadd.f32 %v400, %v468
    %470 = vdwg.mxu0
    %v471 = vand.u32 %v162, 4294901760
    %472 = vmatpush.msra.mxu0 %v471
    %v473 = vand.u32 %v161, 4294901760
    %474 = vmatpush.msra.mxu0 %v473
    %v475 = vand.u32 %v160, 4294901760
    %476 = vmatpush.msra.mxu0 %v475
    %v477 = vand.u32 %v159, 4294901760
    %478 = vmatpush.msra.mxu0 %v477
    %v479 = vand.u32 %v158, 4294901760
    %480 = vmatpush.msra.mxu0 %v479
    %v481 = vand.u32 %v157, 4294901760
    %482 = vmatpush.msra.mxu0 %v481
    %v483 = vand.u32 %v156, 4294901760
    %484 = vmatpush.msra.mxu0 %v483
    %v485 = vand.u32 %v155, 4294901760
    %486 = vmatpush.msra.mxu0 %v485
    %v487 = vand.u32 %v154, 4294901760
    %488 = vmatpush.msra.mxu0 %v487
    %v489 = vand.u32 %v153, 4294901760
    %490 = vmatpush.msra.mxu0 %v489
    %v491 = vand.u32 %v152, 4294901760
    %492 = vmatpush.msra.mxu0 %v491
    %v493 = vand.u32 %v151, 4294901760
    %494 = vmatpush.msra.mxu0 %v493
    %v495 = vand.u32 %v150, 4294901760
    %496 = vmatpush.msra.mxu0 %v495
    %v497 = vand.u32 %v149, 4294901760
    %498 = vmatpush.msra.mxu0 %v497
    %v499 = vand.u32 %v148, 4294901760
    %500 = vmatpush.msra.mxu0 %v499
    %v501 = vand.u32 %v147, 4294901760
    %502 = vmatpush.msra.mxu0 %v501
    %v503 = vand.u32 %v146, 4294901760
    %504 = vmatmul.f32.gmra.mxu0 %v503
    %v505 = vpop.f32.mrf.mxu0
    %v506 = vadd.f32 %v469, %v505
    %507 = vdwg.mxu0
    %v508 = vmax.f32 %v506, 0.0
    %v509 = vld [vmem:[#allocation4] sm:$0xff]
    %v510 = vld [vmem:[#allocation4 + $0x8] sm:$0xff]
    %v511 = vld [vmem:[#allocation4 + $0x10] sm:$0xff]
    %v512 = vld [vmem:[#allocation4 + $0x18] sm:$0xff]
    %v513 = vld [vmem:[#allocation4 + $0x20] sm:$0xff]
    %v514 = vld [vmem:[#allocation4 + $0x28] sm:$0xff]
    %v515 = vld [vmem:[#allocation4 + $0x30] sm:$0xff]
    %v516 = vld [vmem:[#allocation4 + $0x38] sm:$0xff]
    %v517 = vld [vmem:[#allocation4 + $0x40] sm:$0xff]
    %v518 = vld [vmem:[#allocation4 + $0x48] sm:$0xff]
    %v519 = vld [vmem:[#allocation4 + $0x50] sm:$0xff]
    %v520 = vld [vmem:[#allocation4 + $0x58] sm:$0xff]
    %v521 = vld [vmem:[#allocation4 + $0x60] sm:$0xff]
    %v522 = vld [vmem:[#allocation4 + $0x68] sm:$0xff]
    %v523 = vld [vmem:[#allocation4 + $0x70] sm:$0xff]
    %v524 = vld [vmem:[#allocation4 + $0x78] sm:$0xff]
    %v525 = vld [vmem:[%s5] sm:$0x1]
    %v527 = vperm.slane %v525, 0
    %v529 = vand.u32 %v524, 4294901760
    %530 = vmatpush.msra.mxu0 %v529
    %v531 = vand.u32 %v523, 4294901760
    %532 = vmatpush.msra.mxu0 %v531
    %v533 = vand.u32 %v522, 4294901760
    %534 = vmatpush.msra.mxu0 %v533
    %v535 = vand.u32 %v521, 4294901760
    %536 = vmatpush.msra.mxu0 %v535
    %v537 = vand.u32 %v520, 4294901760
    %538 = vmatpush.msra.mxu0 %v537
    %v539 = vand.u32 %v519, 4294901760
    %540 = vmatpush.msra.mxu0 %v539
    %v541 = vand.u32 %v518, 4294901760
    %542 = vmatpush.msra.mxu0 %v541
    %v543 = vand.u32 %v517, 4294901760
    %544 = vmatpush.msra.mxu0 %v543
    %v545 = vand.u32 %v516, 4294901760
    %546 = vmatpush.msra.mxu0 %v545
    %v547 = vand.u32 %v515, 4294901760
    %548 = vmatpush.msra.mxu0 %v547
    %v549 = vand.u32 %v514, 4294901760
    %550 = vmatpush.msra.mxu0 %v549
    %v551 = vand.u32 %v513, 4294901760
    %552 = vmatpush.msra.mxu0 %v551
    %v553 = vand.u32 %v512, 4294901760
    %554 = vmatpush.msra.mxu0 %v553
    %v555 = vand.u32 %v511, 4294901760
    %556 = vmatpush.msra.mxu0 %v555
    %v557 = vand.u32 %v510, 4294901760
    %558 = vmatpush.msra.mxu0 %v557
    %v559 = vand.u32 %v509, 4294901760
    %560 = vmatpush.msra.mxu0 %v559
    %v561 = vand.u32 %v508, 4294901760
    %v562 = vsub.f32 %v508, %v561
    %v563 = vand.u32 %v562, 4294901760
    %v564 = vsub.f32 %v562, %v563
    %v565 = vand.u32 %v564, 4294901760
    %566 = vmatmul.f32.gmra.mxu0 %v565
    %v567 = vpop.f32.mrf.mxu0
    %v568 = vadd.f32 %v527, %v567
    %569 = vdwg.mxu0
    %v570 = vand.u32 %v524, 4294901760
    %v571 = vsub.f32 %v524, %v570
    %v572 = vand.u32 %v571, 4294901760
    %v573 = vsub.f32 %v571, %v572
    %v574 = vand.u32 %v573, 4294901760
    %575 = vmatpush.msra.mxu0 %v574
    %v576 = vand.u32 %v523, 4294901760
    %v577 = vsub.f32 %v523, %v576
    %v578 = vand.u32 %v577, 4294901760
    %v579 = vsub.f32 %v577, %v578
    %v580 = vand.u32 %v579, 4294901760
    %581 = vmatpush.msra.mxu0 %v580
    %v582 = vand.u32 %v522, 4294901760
    %v583 = vsub.f32 %v522, %v582
    %v584 = vand.u32 %v583, 4294901760
    %v585 = vsub.f32 %v583, %v584
    %v586 = vand.u32 %v585, 4294901760
    %587 = vmatpush.msra.mxu0 %v586
    %v588 = vand.u32 %v521, 4294901760
    %v589 = vsub.f32 %v521, %v588
    %v590 = vand.u32 %v589, 4294901760
    %v591 = vsub.f32 %v589, %v590
    %v592 = vand.u32 %v591, 4294901760
    %593 = vmatpush.msra.mxu0 %v592
    %v594 = vand.u32 %v520, 4294901760
    %v595 = vsub.f32 %v520, %v594
    %v596 = vand.u32 %v595, 4294901760
    %v597 = vsub.f32 %v595, %v596
    %v598 = vand.u32 %v597, 4294901760
    %599 = vmatpush.msra.mxu0 %v598
    %v600 = vand.u32 %v519, 4294901760
    %v601 = vsub.f32 %v519, %v600
    %v602 = vand.u32 %v601, 4294901760
    %v603 = vsub.f32 %v601, %v602
    %v604 = vand.u32 %v603, 4294901760
    %605 = vmatpush.msra.mxu0 %v604
    %v606 = vand.u32 %v518, 4294901760
    %v607 = vsub.f32 %v518, %v606
    %v608 = vand.u32 %v607, 4294901760
    %v609 = vsub.f32 %v607, %v608
    %v610 = vand.u32 %v609, 4294901760
    %611 = vmatpush.msra.mxu0 %v610
    %v612 = vand.u32 %v517, 4294901760
    %v613 = vsub.f32 %v517, %v612
    %v614 = vand.u32 %v613, 4294901760
    %v615 = vsub.f32 %v613, %v614
    %v616 = vand.u32 %v615, 4294901760
    %617 = vmatpush.msra.mxu0 %v616
    %v618 = vand.u32 %v516, 4294901760
    %v619 = vsub.f32 %v516, %v618
    %v620 = vand.u32 %v619, 4294901760
    %v621 = vsub.f32 %v619, %v620
    %v622 = vand.u32 %v621, 4294901760
    %623 = vmatpush.msra.mxu0 %v622
    %v624 = vand.u32 %v515, 4294901760
    %v625 = vsub.f32 %v515, %v624
    %v626 = vand.u32 %v625, 4294901760
    %v627 = vsub.f32 %v625, %v626
    %v628 = vand.u32 %v627, 4294901760
    %629 = vmatpush.msra.mxu0 %v628
    %v630 = vand.u32 %v514, 4294901760
    %v631 = vsub.f32 %v514, %v630
    %v632 = vand.u32 %v631, 4294901760
    %v633 = vsub.f32 %v631, %v632
    %v634 = vand.u32 %v633, 4294901760
    %635 = vmatpush.msra.mxu0 %v634
    %v636 = vand.u32 %v513, 4294901760
    %v637 = vsub.f32 %v513, %v636
    %v638 = vand.u32 %v637, 4294901760
    %v639 = vsub.f32 %v637, %v638
    %v640 = vand.u32 %v639, 4294901760
    %641 = vmatpush.msra.mxu0 %v640
    %v642 = vand.u32 %v512, 4294901760
    %v643 = vsub.f32 %v512, %v642
    %v644 = vand.u32 %v643, 4294901760
    %v645 = vsub.f32 %v643, %v644
    %v646 = vand.u32 %v645, 4294901760
    %647 = vmatpush.msra.mxu0 %v646
    %v648 = vand.u32 %v511, 4294901760
    %v649 = vsub.f32 %v511, %v648
    %v650 = vand.u32 %v649, 4294901760
    %v651 = vsub.f32 %v649, %v650
    %v652 = vand.u32 %v651, 4294901760
    %653 = vmatpush.msra.mxu0 %v652
    %v654 = vand.u32 %v510, 4294901760
    %v655 = vsub.f32 %v510, %v654
    %v656 = vand.u32 %v655, 4294901760
    %v657 = vsub.f32 %v655, %v656
    %v658 = vand.u32 %v657, 4294901760
    %659 = vmatpush.msra.mxu0 %v658
    %v660 = vand.u32 %v509, 4294901760
    %v661 = vsub.f32 %v509, %v660
    %v662 = vand.u32 %v661, 4294901760
    %v663 = vsub.f32 %v661, %v662
    %v664 = vand.u32 %v663, 4294901760
    %665 = vmatpush.msra.mxu0 %v664
    %v666 = vand.u32 %v508, 4294901760
    %667 = vmatmul.f32.gmra.mxu0 %v666
    %v668 = vpop.f32.mrf.mxu0
    %v669 = vadd.f32 %v568, %v668
    %670 = vdwg.mxu0
    %v671 = vand.u32 %v524, 4294901760
    %v672 = vsub.f32 %v524, %v671
    %673 = vmatpush.msra.mxu0 %v672
    %v674 = vand.u32 %v523, 4294901760
    %v675 = vsub.f32 %v523, %v674
    %676 = vmatpush.msra.mxu0 %v675
    %v677 = vand.u32 %v522, 4294901760
    %v678 = vsub.f32 %v522, %v677
    %679 = vmatpush.msra.mxu0 %v678
    %v680 = vand.u32 %v521, 4294901760
    %v681 = vsub.f32 %v521, %v680
    %682 = vmatpush.msra.mxu0 %v681
    %v683 = vand.u32 %v520, 4294901760
    %v684 = vsub.f32 %v520, %v683
    %685 = vmatpush.msra.mxu0 %v684
    %v686 = vand.u32 %v519, 4294901760
    %v687 = vsub.f32 %v519, %v686
    %688 = vmatpush.msra.mxu0 %v687
    %v689 = vand.u32 %v518, 4294901760
    %v690 = vsub.f32 %v518, %v689
    %691 = vmatpush.msra.mxu0 %v690
    %v692 = vand.u32 %v517, 4294901760
    %v693 = vsub.f32 %v517, %v692
    %694 = vmatpush.msra.mxu0 %v693
    %v695 = vand.u32 %v516, 4294901760
    %v696 = vsub.f32 %v516, %v695
    %697 = vmatpush.msra.mxu0 %v696
    %v698 = vand.u32 %v515, 4294901760
    %v699 = vsub.f32 %v515, %v698
    %700 = vmatpush.msra.mxu0 %v699
    %v701 = vand.u32 %v514, 4294901760
    %v702 = vsub.f32 %v514, %v701
    %703 = vmatpush.msra.mxu0 %v702
    %v704 = vand.u32 %v513, 4294901760
    %v705 = vsub.f32 %v513, %v704
    %706 = vmatpush.msra.mxu0 %v705
    %v707 = vand.u32 %v512, 4294901760
    %v708 = vsub.f32 %v512, %v707
    %709 = vmatpush.msra.mxu0 %v708
    %v710 = vand.u32 %v511, 4294901760
    %v711 = vsub.f32 %v511, %v710
    %712 = vmatpush.msra.mxu0 %v711
    %v713 = vand.u32 %v510, 4294901760
    %v714 = vsub.f32 %v510, %v713
    %715 = vmatpush.msra.mxu0 %v714
    %v716 = vand.u32 %v509, 4294901760
    %v717 = vsub.f32 %v509, %v716
    %718 = vmatpush.msra.mxu0 %v717
    %v719 = vand.u32 %v508, 4294901760
    %v720 = vsub.f32 %v508, %v719
    %721 = vmatmul.f32.gmra.mxu0 %v720
    %v722 = vpop.f32.mrf.mxu0
    %v723 = vadd.f32 %v669, %v722
    %724 = vdwg.mxu0
    %v725 = vand.u32 %v524, 4294901760
    %726 = vmatpush.msra.mxu0 %v725
    %v727 = vand.u32 %v523, 4294901760
    %728 = vmatpush.msra.mxu0 %v727
    %v729 = vand.u32 %v522, 4294901760
    %730 = vmatpush.msra.mxu0 %v729
    %v731 = vand.u32 %v521, 4294901760
    %732 = vmatpush.msra.mxu0 %v731
    %v733 = vand.u32 %v520, 4294901760
    %734 = vmatpush.msra.mxu0 %v733
    %v735 = vand.u32 %v519, 4294901760
    %736 = vmatpush.msra.mxu0 %v735
    %v737 = vand.u32 %v518, 4294901760
    %738 = vmatpush.msra.mxu0 %v737
    %v739 = vand.u32 %v517, 4294901760
    %740 = vmatpush.msra.mxu0 %v739
    %v741 = vand.u32 %v516, 4294901760
    %742 = vmatpush.msra.mxu0 %v741
    %v743 = vand.u32 %v515, 4294901760
    %744 = vmatpush.msra.mxu0 %v743
    %v745 = vand.u32 %v514, 4294901760
    %746 = vmatpush.msra.mxu0 %v745
    %v747 = vand.u32 %v513, 4294901760
    %748 = vmatpush.msra.mxu0 %v747
    %v749 = vand.u32 %v512, 4294901760
    %750 = vmatpush.msra.mxu0 %v749
    %v751 = vand.u32 %v511, 4294901760
    %752 = vmatpush.msra.mxu0 %v751
    %v753 = vand.u32 %v510, 4294901760
    %754 = vmatpush.msra.mxu0 %v753
    %v755 = vand.u32 %v509, 4294901760
    %756 = vmatpush.msra.mxu0 %v755
    %v757 = vand.u32 %v508, 4294901760
    %v758 = vsub.f32 %v508, %v757
    %v759 = vand.u32 %v758, 4294901760
    %760 = vmatmul.f32.gmra.mxu0 %v759
    %v761 = vpop.f32.mrf.mxu0
    %v762 = vadd.f32 %v723, %v761
    %763 = vdwg.mxu0
    %v764 = vand.u32 %v524, 4294901760
    %v765 = vsub.f32 %v524, %v764
    %v766 = vand.u32 %v765, 4294901760
    %767 = vmatpush.msra.mxu0 %v766
    %v768 = vand.u32 %v523, 4294901760
    %v769 = vsub.f32 %v523, %v768
    %v770 = vand.u32 %v769, 4294901760
    %771 = vmatpush.msra.mxu0 %v770
    %v772 = vand.u32 %v522, 4294901760
    %v773 = vsub.f32 %v522, %v772
    %v774 = vand.u32 %v773, 4294901760
    %775 = vmatpush.msra.mxu0 %v774
    %v776 = vand.u32 %v521, 4294901760
    %v777 = vsub.f32 %v521, %v776
    %v778 = vand.u32 %v777, 4294901760
    %779 = vmatpush.msra.mxu0 %v778
    %v780 = vand.u32 %v520, 4294901760
    %v781 = vsub.f32 %v520, %v780
    %v782 = vand.u32 %v781, 4294901760
    %783 = vmatpush.msra.mxu0 %v782
    %v784 = vand.u32 %v519, 4294901760
    %v785 = vsub.f32 %v519, %v784
    %v786 = vand.u32 %v785, 4294901760
    %787 = vmatpush.msra.mxu0 %v786
    %v788 = vand.u32 %v518, 4294901760
    %v789 = vsub.f32 %v518, %v788
    %v790 = vand.u32 %v789, 4294901760
    %791 = vmatpush.msra.mxu0 %v790
    %v792 = vand.u32 %v517, 4294901760
    %v793 = vsub.f32 %v517, %v792
    %v794 = vand.u32 %v793, 4294901760
    %795 = vmatpush.msra.mxu0 %v794
    %v796 = vand.u32 %v516, 4294901760
    %v797 = vsub.f32 %v516, %v796
    %v798 = vand.u32 %v797, 4294901760
    %799 = vmatpush.msra.mxu0 %v798
    %v800 = vand.u32 %v515, 4294901760
    %v801 = vsub.f32 %v515, %v800
    %v802 = vand.u32 %v801, 4294901760
    %803 = vmatpush.msra.mxu0 %v802
    %v804 = vand.u32 %v514, 4294901760
    %v805 = vsub.f32 %v514, %v804
    %v806 = vand.u32 %v805, 4294901760
    %807 = vmatpush.msra.mxu0 %v806
    %v808 = vand.u32 %v513, 4294901760
    %v809 = vsub.f32 %v513, %v808
    %v810 = vand.u32 %v809, 4294901760
    %811 = vmatpush.msra.mxu0 %v810
    %v812 = vand.u32 %v512, 4294901760
    %v813 = vsub.f32 %v512, %v812
    %v814 = vand.u32 %v813, 4294901760
    %815 = vmatpush.msra.mxu0 %v814
    %v816 = vand.u32 %v511, 4294901760
    %v817 = vsub.f32 %v511, %v816
    %v818 = vand.u32 %v817, 4294901760
    %819 = vmatpush.msra.mxu0 %v818
    %v820 = vand.u32 %v510, 4294901760
    %v821 = vsub.f32 %v510, %v820
    %v822 = vand.u32 %v821, 4294901760
    %823 = vmatpush.msra.mxu0 %v822
    %v824 = vand.u32 %v509, 4294901760
    %v825 = vsub.f32 %v509, %v824
    %v826 = vand.u32 %v825, 4294901760
    %827 = vmatpush.msra.mxu0 %v826
    %v828 = vand.u32 %v508, 4294901760
    %829 = vmatmul.f32.gmra.mxu0 %v828
    %v830 = vpop.f32.mrf.mxu0
    %v831 = vadd.f32 %v762, %v830
    %832 = vdwg.mxu0
    %v833 = vand.u32 %v524, 4294901760
    %834 = vmatpush.msra.mxu0 %v833
    %v835 = vand.u32 %v523, 4294901760
    %836 = vmatpush.msra.mxu0 %v835
    %v837 = vand.u32 %v522, 4294901760
    %838 = vmatpush.msra.mxu0 %v837
    %v839 = vand.u32 %v521, 4294901760
    %840 = vmatpush.msra.mxu0 %v839
    %v841 = vand.u32 %v520, 4294901760
    %842 = vmatpush.msra.mxu0 %v841
    %v843 = vand.u32 %v519, 4294901760
    %844 = vmatpush.msra.mxu0 %v843
    %v845 = vand.u32 %v518, 4294901760
    %846 = vmatpush.msra.mxu0 %v845
    %v847 = vand.u32 %v517, 4294901760
    %848 = vmatpush.msra.mxu0 %v847
    %v849 = vand.u32 %v516, 4294901760
    %850 = vmatpush.msra.mxu0 %v849
    %v851 = vand.u32 %v515, 4294901760
    %852 = vmatpush.msra.mxu0 %v851
    %v853 = vand.u32 %v514, 4294901760
    %854 = vmatpush.msra.mxu0 %v853
    %v855 = vand.u32 %v513, 4294901760
    %856 = vmatpush.msra.mxu0 %v855
    %v857 = vand.u32 %v512, 4294901760
    %858 = vmatpush.msra.mxu0 %v857
    %v859 = vand.u32 %v511, 4294901760
    %860 = vmatpush.msra.mxu0 %v859
    %v861 = vand.u32 %v510, 4294901760
    %862 = vmatpush.msra.mxu0 %v861
    %v863 = vand.u32 %v509, 4294901760
    %864 = vmatpush.msra.mxu0 %v863
    %v865 = vand.u32 %v508, 4294901760
    %866 = vmatmul.f32.gmra.mxu0 %v865
    %v867 = vpop.f32.mrf.mxu0
    %v868 = vadd.f32 %v831, %v867
    %869 = vdwg.mxu0
    %v870 = vmax.f32 %v868, 0.0
    %v871 = vld [vmem:[#allocation6] sm:$0xff]
    %v872 = vld [vmem:[#allocation6 + $0x8] sm:$0xff]
    %v873 = vld [vmem:[#allocation6 + $0x10] sm:$0xff]
    %v874 = vld [vmem:[#allocation6 + $0x18] sm:$0xff]
    %v875 = vld [vmem:[#allocation6 + $0x20] sm:$0xff]
    %v876 = vld [vmem:[#allocation6 + $0x28] sm:$0xff]
    %v877 = vld [vmem:[#allocation6 + $0x30] sm:$0xff]
    %v878 = vld [vmem:[#allocation6 + $0x38] sm:$0xff]
    %v879 = vld [vmem:[#allocation6 + $0x40] sm:$0xff]
    %v880 = vld [vmem:[#allocation6 + $0x48] sm:$0xff]
    %v881 = vld [vmem:[#allocation6 + $0x50] sm:$0xff]
    %v882 = vld [vmem:[#allocation6 + $0x58] sm:$0xff]
    %v883 = vld [vmem:[#allocation6 + $0x60] sm:$0xff]
    %v884 = vld [vmem:[#allocation6 + $0x68] sm:$0xff]
    %v885 = vld [vmem:[#allocation6 + $0x70] sm:$0xff]
    %v886 = vld [vmem:[#allocation6 + $0x78] sm:$0xff]
    %v887 = vld [vmem:[%s7] sm:$0x1]
    %v889 = vperm.slane %v887, 0
    %v891 = vand.u32 %v886, 4294901760
    %892 = vmatpush.msra.mxu0 %v891
    %v893 = vand.u32 %v885, 4294901760
    %894 = vmatpush.msra.mxu0 %v893
    %v895 = vand.u32 %v884, 4294901760
    %896 = vmatpush.msra.mxu0 %v895
    %v897 = vand.u32 %v883, 4294901760
    %898 = vmatpush.msra.mxu0 %v897
    %v899 = vand.u32 %v882, 4294901760
    %900 = vmatpush.msra.mxu0 %v899
    %v901 = vand.u32 %v881, 4294901760
    %902 = vmatpush.msra.mxu0 %v901
    %v903 = vand.u32 %v880, 4294901760
    %904 = vmatpush.msra.mxu0 %v903
    %v905 = vand.u32 %v879, 4294901760
    %906 = vmatpush.msra.mxu0 %v905
    %v907 = vand.u32 %v878, 4294901760
    %908 = vmatpush.msra.mxu0 %v907
    %v909 = vand.u32 %v877, 4294901760
    %910 = vmatpush.msra.mxu0 %v909
    %v911 = vand.u32 %v876, 4294901760
    %912 = vmatpush.msra.mxu0 %v911
    %v913 = vand.u32 %v875, 4294901760
    %914 = vmatpush.msra.mxu0 %v913
    %v915 = vand.u32 %v874, 4294901760
    %916 = vmatpush.msra.mxu0 %v915
    %v917 = vand.u32 %v873, 4294901760
    %918 = vmatpush.msra.mxu0 %v917
    %v919 = vand.u32 %v872, 4294901760
    %920 = vmatpush.msra.mxu0 %v919
    %v921 = vand.u32 %v871, 4294901760
    %922 = vmatpush.msra.mxu0 %v921
    %v923 = vand.u32 %v870, 4294901760
    %v924 = vsub.f32 %v870, %v923
    %v925 = vand.u32 %v924, 4294901760
    %v926 = vsub.f32 %v924, %v925
    %v927 = vand.u32 %v926, 4294901760
    %928 = vmatmul.f32.gmra.mxu0 %v927
    %v929 = vpop.f32.mrf.mxu0
    %v930 = vadd.f32 %v889, %v929
    %931 = vdwg.mxu0
    %v932 = vand.u32 %v886, 4294901760
    %v933 = vsub.f32 %v886, %v932
    %v934 = vand.u32 %v933, 4294901760
    %v935 = vsub.f32 %v933, %v934
    %v936 = vand.u32 %v935, 4294901760
    %937 = vmatpush.msra.mxu0 %v936
    %v938 = vand.u32 %v885, 4294901760
    %v939 = vsub.f32 %v885, %v938
    %v940 = vand.u32 %v939, 4294901760
    %v941 = vsub.f32 %v939, %v940
    %v942 = vand.u32 %v941, 4294901760
    %943 = vmatpush.msra.mxu0 %v942
    %v944 = vand.u32 %v884, 4294901760
    %v945 = vsub.f32 %v884, %v944
    %v946 = vand.u32 %v945, 4294901760
    %v947 = vsub.f32 %v945, %v946
    %v948 = vand.u32 %v947, 4294901760
    %949 = vmatpush.msra.mxu0 %v948
    %v950 = vand.u32 %v883, 4294901760
    %v951 = vsub.f32 %v883, %v950
    %v952 = vand.u32 %v951, 4294901760
    %v953 = vsub.f32 %v951, %v952
    %v954 = vand.u32 %v953, 4294901760
    %955 = vmatpush.msra.mxu0 %v954
    %v956 = vand.u32 %v882, 4294901760
    %v957 = vsub.f32 %v882, %v956
    %v958 = vand.u32 %v957, 4294901760
    %v959 = vsub.f32 %v957, %v958
    %v960 = vand.u32 %v959, 4294901760
    %961 = vmatpush.msra.mxu0 %v960
    %v962 = vand.u32 %v881, 4294901760
    %v963 = vsub.f32 %v881, %v962
    %v964 = vand.u32 %v963, 4294901760
    %v965 = vsub.f32 %v963, %v964
    %v966 = vand.u32 %v965, 4294901760
    %967 = vmatpush.msra.mxu0 %v966
    %v968 = vand.u32 %v880, 4294901760
    %v969 = vsub.f32 %v880, %v968
    %v970 = vand.u32 %v969, 4294901760
    %v971 = vsub.f32 %v969, %v970
    %v972 = vand.u32 %v971, 4294901760
    %973 = vmatpush.msra.mxu0 %v972
    %v974 = vand.u32 %v879, 4294901760
    %v975 = vsub.f32 %v879, %v974
    %v976 = vand.u32 %v975, 4294901760
    %v977 = vsub.f32 %v975, %v976
    %v978 = vand.u32 %v977, 4294901760
    %979 = vmatpush.msra.mxu0 %v978
    %v980 = vand.u32 %v878, 4294901760
    %v981 = vsub.f32 %v878, %v980
    %v982 = vand.u32 %v981, 4294901760
    %v983 = vsub.f32 %v981, %v982
    %v984 = vand.u32 %v983, 4294901760
    %985 = vmatpush.msra.mxu0 %v984
    %v986 = vand.u32 %v877, 4294901760
    %v987 = vsub.f32 %v877, %v986
    %v988 = vand.u32 %v987, 4294901760
    %v989 = vsub.f32 %v987, %v988
    %v990 = vand.u32 %v989, 4294901760
    %991 = vmatpush.msra.mxu0 %v990
    %v992 = vand.u32 %v876, 4294901760
    %v993 = vsub.f32 %v876, %v992
    %v994 = vand.u32 %v993, 4294901760
    %v995 = vsub.f32 %v993, %v994
    %v996 = vand.u32 %v995, 4294901760
    %997 = vmatpush.msra.mxu0 %v996
    %v998 = vand.u32 %v875, 4294901760
    %v999 = vsub.f32 %v875, %v998
    %v1000 = vand.u32 %v999, 4294901760
    %v1001 = vsub.f32 %v999, %v1000
    %v1002 = vand.u32 %v1001, 4294901760
    %1003 = vmatpush.msra.mxu0 %v1002
    %v1004 = vand.u32 %v874, 4294901760
    %v1005 = vsub.f32 %v874, %v1004
    %v1006 = vand.u32 %v1005, 4294901760
    %v1007 = vsub.f32 %v1005, %v1006
    %v1008 = vand.u32 %v1007, 4294901760
    %1009 = vmatpush.msra.mxu0 %v1008
    %v1010 = vand.u32 %v873, 4294901760
    %v1011 = vsub.f32 %v873, %v1010
    %v1012 = vand.u32 %v1011, 4294901760
    %v1013 = vsub.f32 %v1011, %v1012
    %v1014 = vand.u32 %v1013, 4294901760
    %1015 = vmatpush.msra.mxu0 %v1014
    %v1016 = vand.u32 %v872, 4294901760
    %v1017 = vsub.f32 %v872, %v1016
    %v1018 = vand.u32 %v1017, 4294901760
    %v1019 = vsub.f32 %v1017, %v1018
    %v1020 = vand.u32 %v1019, 4294901760
    %1021 = vmatpush.msra.mxu0 %v1020
    %v1022 = vand.u32 %v871, 4294901760
    %v1023 = vsub.f32 %v871, %v1022
    %v1024 = vand.u32 %v1023, 4294901760
    %v1025 = vsub.f32 %v1023, %v1024
    %v1026 = vand.u32 %v1025, 4294901760
    %1027 = vmatpush.msra.mxu0 %v1026
    %v1028 = vand.u32 %v870, 4294901760
    %1029 = vmatmul.f32.gmra.mxu0 %v1028
    %v1030 = vpop.f32.mrf.mxu0
    %v1031 = vadd.f32 %v930, %v1030
    %1032 = vdwg.mxu0
    %v1033 = vand.u32 %v886, 4294901760
    %v1034 = vsub.f32 %v886, %v1033
    %1035 = vmatpush.msra.mxu0 %v1034
    %v1036 = vand.u32 %v885, 4294901760
    %v1037 = vsub.f32 %v885, %v1036
    %1038 = vmatpush.msra.mxu0 %v1037
    %v1039 = vand.u32 %v884, 4294901760
    %v1040 = vsub.f32 %v884, %v1039
    %1041 = vmatpush.msra.mxu0 %v1040
    %v1042 = vand.u32 %v883, 4294901760
    %v1043 = vsub.f32 %v883, %v1042
    %1044 = vmatpush.msra.mxu0 %v1043
    %v1045 = vand.u32 %v882, 4294901760
    %v1046 = vsub.f32 %v882, %v1045
    %1047 = vmatpush.msra.mxu0 %v1046
    %v1048 = vand.u32 %v881, 4294901760
    %v1049 = vsub.f32 %v881, %v1048
    %1050 = vmatpush.msra.mxu0 %v1049
    %v1051 = vand.u32 %v880, 4294901760
    %v1052 = vsub.f32 %v880, %v1051
    %1053 = vmatpush.msra.mxu0 %v1052
    %v1054 = vand.u32 %v879, 4294901760
    %v1055 = vsub.f32 %v879, %v1054
    %1056 = vmatpush.msra.mxu0 %v1055
    %v1057 = vand.u32 %v878, 4294901760
    %v1058 = vsub.f32 %v878, %v1057
    %1059 = vmatpush.msra.mxu0 %v1058
    %v1060 = vand.u32 %v877, 4294901760
    %v1061 = vsub.f32 %v877, %v1060
    %1062 = vmatpush.msra.mxu0 %v1061
    %v1063 = vand.u32 %v876, 4294901760
    %v1064 = vsub.f32 %v876, %v1063
    %1065 = vmatpush.msra.mxu0 %v1064
    %v1066 = vand.u32 %v875, 4294901760
    %v1067 = vsub.f32 %v875, %v1066
    %1068 = vmatpush.msra.mxu0 %v1067
    %v1069 = vand.u32 %v874, 4294901760
    %v1070 = vsub.f32 %v874, %v1069
    %1071 = vmatpush.msra.mxu0 %v1070
    %v1072 = vand.u32 %v873, 4294901760
    %v1073 = vsub.f32 %v873, %v1072
    %1074 = vmatpush.msra.mxu0 %v1073
    %v1075 = vand.u32 %v872, 4294901760
    %v1076 = vsub.f32 %v872, %v1075
    %1077 = vmatpush.msra.mxu0 %v1076
    %v1078 = vand.u32 %v871, 4294901760
    %v1079 = vsub.f32 %v871, %v1078
    %1080 = vmatpush.msra.mxu0 %v1079
    %v1081 = vand.u32 %v870, 4294901760
    %v1082 = vsub.f32 %v870, %v1081
    %1083 = vmatmul.f32.gmra.mxu0 %v1082
    %v1084 = vpop.f32.mrf.mxu0
    %v1085 = vadd.f32 %v1031, %v1084
    %1086 = vdwg.mxu0
    %v1087 = vand.u32 %v886, 4294901760
    %1088 = vmatpush.msra.mxu0 %v1087
    %v1089 = vand.u32 %v885, 4294901760
    %1090 = vmatpush.msra.mxu0 %v1089
    %v1091 = vand.u32 %v884, 4294901760
    %1092 = vmatpush.msra.mxu0 %v1091
    %v1093 = vand.u32 %v883, 4294901760
    %1094 = vmatpush.msra.mxu0 %v1093
    %v1095 = vand.u32 %v882, 4294901760
    %1096 = vmatpush.msra.mxu0 %v1095
    %v1097 = vand.u32 %v881, 4294901760
    %1098 = vmatpush.msra.mxu0 %v1097
    %v1099 = vand.u32 %v880, 4294901760
    %1100 = vmatpush.msra.mxu0 %v1099
    %v1101 = vand.u32 %v879, 4294901760
    %1102 = vmatpush.msra.mxu0 %v1101
    %v1103 = vand.u32 %v878, 4294901760
    %1104 = vmatpush.msra.mxu0 %v1103
    %v1105 = vand.u32 %v877, 4294901760
    %1106 = vmatpush.msra.mxu0 %v1105
    %v1107 = vand.u32 %v876, 4294901760
    %1108 = vmatpush.msra.mxu0 %v1107
    %v1109 = vand.u32 %v875, 4294901760
    %1110 = vmatpush.msra.mxu0 %v1109
    %v1111 = vand.u32 %v874, 4294901760
    %1112 = vmatpush.msra.mxu0 %v1111
    %v1113 = vand.u32 %v873, 4294901760
    %1114 = vmatpush.msra.mxu0 %v1113
    %v1115 = vand.u32 %v872, 4294901760
    %1116 = vmatpush.msra.mxu0 %v1115
    %v1117 = vand.u32 %v871, 4294901760
    %1118 = vmatpush.msra.mxu0 %v1117
    %v1119 = vand.u32 %v870, 4294901760
    %v1120 = vsub.f32 %v870, %v1119
    %v1121 = vand.u32 %v1120, 4294901760
    %1122 = vmatmul.f32.gmra.mxu0 %v1121
    %v1123 = vpop.f32.mrf.mxu0
    %v1124 = vadd.f32 %v1085, %v1123
    %1125 = vdwg.mxu0
    %v1126 = vand.u32 %v886, 4294901760
    %v1127 = vsub.f32 %v886, %v1126
    %v1128 = vand.u32 %v1127, 4294901760
    %1129 = vmatpush.msra.mxu0 %v1128
    %v1130 = vand.u32 %v885, 4294901760
    %v1131 = vsub.f32 %v885, %v1130
    %v1132 = vand.u32 %v1131, 4294901760
    %1133 = vmatpush.msra.mxu0 %v1132
    %v1134 = vand.u32 %v884, 4294901760
    %v1135 = vsub.f32 %v884, %v1134
    %v1136 = vand.u32 %v1135, 4294901760
    %1137 = vmatpush.msra.mxu0 %v1136
    %v1138 = vand.u32 %v883, 4294901760
    %v1139 = vsub.f32 %v883, %v1138
    %v1140 = vand.u32 %v1139, 4294901760
    %1141 = vmatpush.msra.mxu0 %v1140
    %v1142 = vand.u32 %v882, 4294901760
    %v1143 = vsub.f32 %v882, %v1142
    %v1144 = vand.u32 %v1143, 4294901760
    %1145 = vmatpush.msra.mxu0 %v1144
    %v1146 = vand.u32 %v881, 4294901760
    %v1147 = vsub.f32 %v881, %v1146
    %v1148 = vand.u32 %v1147, 4294901760
    %1149 = vmatpush.msra.mxu0 %v1148
    %v1150 = vand.u32 %v880, 4294901760
    %v1151 = vsub.f32 %v880, %v1150
    %v1152 = vand.u32 %v1151, 4294901760
    %1153 = vmatpush.msra.mxu0 %v1152
    %v1154 = vand.u32 %v879, 4294901760
    %v1155 = vsub.f32 %v879, %v1154
    %v1156 = vand.u32 %v1155, 4294901760
    %1157 = vmatpush.msra.mxu0 %v1156
    %v1158 = vand.u32 %v878, 4294901760
    %v1159 = vsub.f32 %v878, %v1158
    %v1160 = vand.u32 %v1159, 4294901760
    %1161 = vmatpush.msra.mxu0 %v1160
    %v1162 = vand.u32 %v877, 4294901760
    %v1163 = vsub.f32 %v877, %v1162
    %v1164 = vand.u32 %v1163, 4294901760
    %1165 = vmatpush.msra.mxu0 %v1164
    %v1166 = vand.u32 %v876, 4294901760
    %v1167 = vsub.f32 %v876, %v1166
    %v1168 = vand.u32 %v1167, 4294901760
    %1169 = vmatpush.msra.mxu0 %v1168
    %v1170 = vand.u32 %v875, 4294901760
    %v1171 = vsub.f32 %v875, %v1170
    %v1172 = vand.u32 %v1171, 4294901760
    %1173 = vmatpush.msra.mxu0 %v1172
    %v1174 = vand.u32 %v874, 4294901760
    %v1175 = vsub.f32 %v874, %v1174
    %v1176 = vand.u32 %v1175, 4294901760
    %1177 = vmatpush.msra.mxu0 %v1176
    %v1178 = vand.u32 %v873, 4294901760
    %v1179 = vsub.f32 %v873, %v1178
    %v1180 = vand.u32 %v1179, 4294901760
    %1181 = vmatpush.msra.mxu0 %v1180
    %v1182 = vand.u32 %v872, 4294901760
    %v1183 = vsub.f32 %v872, %v1182
    %v1184 = vand.u32 %v1183, 4294901760
    %1185 = vmatpush.msra.mxu0 %v1184
    %v1186 = vand.u32 %v871, 4294901760
    %v1187 = vsub.f32 %v871, %v1186
    %v1188 = vand.u32 %v1187, 4294901760
    %1189 = vmatpush.msra.mxu0 %v1188
    %v1190 = vand.u32 %v870, 4294901760
    %1191 = vmatmul.f32.gmra.mxu0 %v1190
    %v1192 = vpop.f32.mrf.mxu0
    %v1193 = vadd.f32 %v1124, %v1192
    %1194 = vdwg.mxu0
    %v1195 = vand.u32 %v886, 4294901760
    %1196 = vmatpush.msra.mxu0 %v1195
    %v1197 = vand.u32 %v885, 4294901760
    %1198 = vmatpush.msra.mxu0 %v1197
    %v1199 = vand.u32 %v884, 4294901760
    %1200 = vmatpush.msra.mxu0 %v1199
    %v1201 = vand.u32 %v883, 4294901760
    %1202 = vmatpush.msra.mxu0 %v1201
    %v1203 = vand.u32 %v882, 4294901760
    %1204 = vmatpush.msra.mxu0 %v1203
    %v1205 = vand.u32 %v881, 4294901760
    %1206 = vmatpush.msra.mxu0 %v1205
    %v1207 = vand.u32 %v880, 4294901760
    %1208 = vmatpush.msra.mxu0 %v1207
    %v1209 = vand.u32 %v879, 4294901760
    %1210 = vmatpush.msra.mxu0 %v1209
    %v1211 = vand.u32 %v878, 4294901760
    %1212 = vmatpush.msra.mxu0 %v1211
    %v1213 = vand.u32 %v877, 4294901760
    %1214 = vmatpush.msra.mxu0 %v1213
    %v1215 = vand.u32 %v876, 4294901760
    %1216 = vmatpush.msra.mxu0 %v1215
    %v1217 = vand.u32 %v875, 4294901760
    %1218 = vmatpush.msra.mxu0 %v1217
    %v1219 = vand.u32 %v874, 4294901760
    %1220 = vmatpush.msra.mxu0 %v1219
    %v1221 = vand.u32 %v873, 4294901760
    %1222 = vmatpush.msra.mxu0 %v1221
    %v1223 = vand.u32 %v872, 4294901760
    %1224 = vmatpush.msra.mxu0 %v1223
    %v1225 = vand.u32 %v871, 4294901760
    %1226 = vmatpush.msra.mxu0 %v1225
    %v1227 = vand.u32 %v870, 4294901760
    %1228 = vmatmul.f32.gmra.mxu0 %v1227
    %v1229 = vpop.f32.mrf.mxu0
    %v1230 = vadd.f32 %v1193, %v1229
    %1231 = vdwg.mxu0
    %v1232 = vmax.f32 %v1230, 0.0
    %v1233 = vld [vmem:[#allocation7] sm:$0xff]
    %v1234 = vld [vmem:[#allocation7 + $0x8] sm:$0xff]
    %v1235 = vld [vmem:[#allocation7 + $0x10] sm:$0xff]
    %v1236 = vld [vmem:[#allocation7 + $0x18] sm:$0xff]
    %v1237 = vld [vmem:[#allocation7 + $0x20] sm:$0xff]
    %v1238 = vld [vmem:[#allocation7 + $0x28] sm:$0xff]
    %v1239 = vld [vmem:[#allocation7 + $0x30] sm:$0xff]
    %v1240 = vld [vmem:[#allocation7 + $0x38] sm:$0xff]
    %v1241 = vld [vmem:[#allocation7 + $0x40] sm:$0xff]
    %v1242 = vld [vmem:[#allocation7 + $0x48] sm:$0xff]
    %v1243 = vld [vmem:[#allocation7 + $0x50] sm:$0xff]
    %v1244 = vld [vmem:[#allocation7 + $0x58] sm:$0xff]
    %v1245 = vld [vmem:[#allocation7 + $0x60] sm:$0xff]
    %v1246 = vld [vmem:[#allocation7 + $0x68] sm:$0xff]
    %v1247 = vld [vmem:[#allocation7 + $0x70] sm:$0xff]
    %v1248 = vld [vmem:[#allocation7 + $0x78] sm:$0xff]
    %v1249 = vld [vmem:[%s9] sm:$0x1]
    %v1251 = vperm.slane %v1249, 0
    %v1253 = vand.u32 %v1248, 4294901760
    %1254 = vmatpush.msra.mxu0 %v1253
    %v1255 = vand.u32 %v1247, 4294901760
    %1256 = vmatpush.msra.mxu0 %v1255
    %v1257 = vand.u32 %v1246, 4294901760
    %1258 = vmatpush.msra.mxu0 %v1257
    %v1259 = vand.u32 %v1245, 4294901760
    %1260 = vmatpush.msra.mxu0 %v1259
    %v1261 = vand.u32 %v1244, 4294901760
    %1262 = vmatpush.msra.mxu0 %v1261
    %v1263 = vand.u32 %v1243, 4294901760
    %1264 = vmatpush.msra.mxu0 %v1263
    %v1265 = vand.u32 %v1242, 4294901760
    %1266 = vmatpush.msra.mxu0 %v1265
    %v1267 = vand.u32 %v1241, 4294901760
    %1268 = vmatpush.msra.mxu0 %v1267
    %v1269 = vand.u32 %v1240, 4294901760
    %1270 = vmatpush.msra.mxu0 %v1269
    %v1271 = vand.u32 %v1239, 4294901760
    %1272 = vmatpush.msra.mxu0 %v1271
    %v1273 = vand.u32 %v1238, 4294901760
    %1274 = vmatpush.msra.mxu0 %v1273
    %v1275 = vand.u32 %v1237, 4294901760
    %1276 = vmatpush.msra.mxu0 %v1275
    %v1277 = vand.u32 %v1236, 4294901760
    %1278 = vmatpush.msra.mxu0 %v1277
    %v1279 = vand.u32 %v1235, 4294901760
    %1280 = vmatpush.msra.mxu0 %v1279
    %v1281 = vand.u32 %v1234, 4294901760
    %1282 = vmatpush.msra.mxu0 %v1281
    %v1283 = vand.u32 %v1233, 4294901760
    %1284 = vmatpush.msra.mxu0 %v1283
    %v1285 = vand.u32 %v1232, 4294901760
    %v1286 = vsub.f32 %v1232, %v1285
    %v1287 = vand.u32 %v1286, 4294901760
    %v1288 = vsub.f32 %v1286, %v1287
    %v1289 = vand.u32 %v1288, 4294901760
    %1290 = vmatmul.f32.gmra.mxu0 %v1289
    %v1291 = vpop.f32.mrf.mxu0
    %v1292 = vadd.f32 %v1251, %v1291
    %1293 = vdwg.mxu0
    %v1294 = vand.u32 %v1248, 4294901760
    %v1295 = vsub.f32 %v1248, %v1294
    %v1296 = vand.u32 %v1295, 4294901760
    %v1297 = vsub.f32 %v1295, %v1296
    %v1298 = vand.u32 %v1297, 4294901760
    %1299 = vmatpush.msra.mxu0 %v1298
    %v1300 = vand.u32 %v1247, 4294901760
    %v1301 = vsub.f32 %v1247, %v1300
    %v1302 = vand.u32 %v1301, 4294901760
    %v1303 = vsub.f32 %v1301, %v1302
    %v1304 = vand.u32 %v1303, 4294901760
    %1305 = vmatpush.msra.mxu0 %v1304
    %v1306 = vand.u32 %v1246, 4294901760
    %v1307 = vsub.f32 %v1246, %v1306
    %v1308 = vand.u32 %v1307, 4294901760
    %v1309 = vsub.f32 %v1307, %v1308
    %v1310 = vand.u32 %v1309, 4294901760
    %1311 = vmatpush.msra.mxu0 %v1310
    %v1312 = vand.u32 %v1245, 4294901760
    %v1313 = vsub.f32 %v1245, %v1312
    %v1314 = vand.u32 %v1313, 4294901760
    %v1315 = vsub.f32 %v1313, %v1314
    %v1316 = vand.u32 %v1315, 4294901760
    %1317 = vmatpush.msra.mxu0 %v1316
    %v1318 = vand.u32 %v1244, 4294901760
    %v1319 = vsub.f32 %v1244, %v1318
    %v1320 = vand.u32 %v1319, 4294901760
    %v1321 = vsub.f32 %v1319, %v1320
    %v1322 = vand.u32 %v1321, 4294901760
    %1323 = vmatpush.msra.mxu0 %v1322
    %v1324 = vand.u32 %v1243, 4294901760
    %v1325 = vsub.f32 %v1243, %v1324
    %v1326 = vand.u32 %v1325, 4294901760
    %v1327 = vsub.f32 %v1325, %v1326
    %v1328 = vand.u32 %v1327, 4294901760
    %1329 = vmatpush.msra.mxu0 %v1328
    %v1330 = vand.u32 %v1242, 4294901760
    %v1331 = vsub.f32 %v1242, %v1330
    %v1332 = vand.u32 %v1331, 4294901760
    %v1333 = vsub.f32 %v1331, %v1332
    %v1334 = vand.u32 %v1333, 4294901760
    %1335 = vmatpush.msra.mxu0 %v1334
    %v1336 = vand.u32 %v1241, 4294901760
    %v1337 = vsub.f32 %v1241, %v1336
    %v1338 = vand.u32 %v1337, 4294901760
    %v1339 = vsub.f32 %v1337, %v1338
    %v1340 = vand.u32 %v1339, 4294901760
    %1341 = vmatpush.msra.mxu0 %v1340
    %v1342 = vand.u32 %v1240, 4294901760
    %v1343 = vsub.f32 %v1240, %v1342
    %v1344 = vand.u32 %v1343, 4294901760
    %v1345 = vsub.f32 %v1343, %v1344
    %v1346 = vand.u32 %v1345, 4294901760
    %1347 = vmatpush.msra.mxu0 %v1346
    %v1348 = vand.u32 %v1239, 4294901760
    %v1349 = vsub.f32 %v1239, %v1348
    %v1350 = vand.u32 %v1349, 4294901760
    %v1351 = vsub.f32 %v1349, %v1350
    %v1352 = vand.u32 %v1351, 4294901760
    %1353 = vmatpush.msra.mxu0 %v1352
    %v1354 = vand.u32 %v1238, 4294901760
    %v1355 = vsub.f32 %v1238, %v1354
    %v1356 = vand.u32 %v1355, 4294901760
    %v1357 = vsub.f32 %v1355, %v1356
    %v1358 = vand.u32 %v1357, 4294901760
    %1359 = vmatpush.msra.mxu0 %v1358
    %v1360 = vand.u32 %v1237, 4294901760
    %v1361 = vsub.f32 %v1237, %v1360
    %v1362 = vand.u32 %v1361, 4294901760
    %v1363 = vsub.f32 %v1361, %v1362
    %v1364 = vand.u32 %v1363, 4294901760
    %1365 = vmatpush.msra.mxu0 %v1364
    %v1366 = vand.u32 %v1236, 4294901760
    %v1367 = vsub.f32 %v1236, %v1366
    %v1368 = vand.u32 %v1367, 4294901760
    %v1369 = vsub.f32 %v1367, %v1368
    %v1370 = vand.u32 %v1369, 4294901760
    %1371 = vmatpush.msra.mxu0 %v1370
    %v1372 = vand.u32 %v1235, 4294901760
    %v1373 = vsub.f32 %v1235, %v1372
    %v1374 = vand.u32 %v1373, 4294901760
    %v1375 = vsub.f32 %v1373, %v1374
    %v1376 = vand.u32 %v1375, 4294901760
    %1377 = vmatpush.msra.mxu0 %v1376
    %v1378 = vand.u32 %v1234, 4294901760
    %v1379 = vsub.f32 %v1234, %v1378
    %v1380 = vand.u32 %v1379, 4294901760
    %v1381 = vsub.f32 %v1379, %v1380
    %v1382 = vand.u32 %v1381, 4294901760
    %1383 = vmatpush.msra.mxu0 %v1382
    %v1384 = vand.u32 %v1233, 4294901760
    %v1385 = vsub.f32 %v1233, %v1384
    %v1386 = vand.u32 %v1385, 4294901760
    %v1387 = vsub.f32 %v1385, %v1386
    %v1388 = vand.u32 %v1387, 4294901760
    %1389 = vmatpush.msra.mxu0 %v1388
    %v1390 = vand.u32 %v1232, 4294901760
    %1391 = vmatmul.f32.gmra.mxu0 %v1390
    %v1392 = vpop.f32.mrf.mxu0
    %v1393 = vadd.f32 %v1292, %v1392
    %1394 = vdwg.mxu0
    %v1395 = vand.u32 %v1248, 4294901760
    %v1396 = vsub.f32 %v1248, %v1395
    %1397 = vmatpush.msra.mxu0 %v1396
    %v1398 = vand.u32 %v1247, 4294901760
    %v1399 = vsub.f32 %v1247, %v1398
    %1400 = vmatpush.msra.mxu0 %v1399
    %v1401 = vand.u32 %v1246, 4294901760
    %v1402 = vsub.f32 %v1246, %v1401
    %1403 = vmatpush.msra.mxu0 %v1402
    %v1404 = vand.u32 %v1245, 4294901760
    %v1405 = vsub.f32 %v1245, %v1404
    %1406 = vmatpush.msra.mxu0 %v1405
    %v1407 = vand.u32 %v1244, 4294901760
    %v1408 = vsub.f32 %v1244, %v1407
    %1409 = vmatpush.msra.mxu0 %v1408
    %v1410 = vand.u32 %v1243, 4294901760
    %v1411 = vsub.f32 %v1243, %v1410
    %1412 = vmatpush.msra.mxu0 %v1411
    %v1413 = vand.u32 %v1242, 4294901760
    %v1414 = vsub.f32 %v1242, %v1413
    %1415 = vmatpush.msra.mxu0 %v1414
    %v1416 = vand.u32 %v1241, 4294901760
    %v1417 = vsub.f32 %v1241, %v1416
    %1418 = vmatpush.msra.mxu0 %v1417
    %v1419 = vand.u32 %v1240, 4294901760
    %v1420 = vsub.f32 %v1240, %v1419
    %1421 = vmatpush.msra.mxu0 %v1420
    %v1422 = vand.u32 %v1239, 4294901760
    %v1423 = vsub.f32 %v1239, %v1422
    %1424 = vmatpush.msra.mxu0 %v1423
    %v1425 = vand.u32 %v1238, 4294901760
    %v1426 = vsub.f32 %v1238, %v1425
    %1427 = vmatpush.msra.mxu0 %v1426
    %v1428 = vand.u32 %v1237, 4294901760
    %v1429 = vsub.f32 %v1237, %v1428
    %1430 = vmatpush.msra.mxu0 %v1429
    %v1431 = vand.u32 %v1236, 4294901760
    %v1432 = vsub.f32 %v1236, %v1431
    %1433 = vmatpush.msra.mxu0 %v1432
    %v1434 = vand.u32 %v1235, 4294901760
    %v1435 = vsub.f32 %v1235, %v1434
    %1436 = vmatpush.msra.mxu0 %v1435
    %v1437 = vand.u32 %v1234, 4294901760
    %v1438 = vsub.f32 %v1234, %v1437
    %1439 = vmatpush.msra.mxu0 %v1438
    %v1440 = vand.u32 %v1233, 4294901760
    %v1441 = vsub.f32 %v1233, %v1440
    %1442 = vmatpush.msra.mxu0 %v1441
    %v1443 = vand.u32 %v1232, 4294901760
    %v1444 = vsub.f32 %v1232, %v1443
    %1445 = vmatmul.f32.gmra.mxu0 %v1444
    %v1446 = vpop.f32.mrf.mxu0
    %v1447 = vadd.f32 %v1393, %v1446
    %1448 = vdwg.mxu0
    %v1449 = vand.u32 %v1248, 4294901760
    %1450 = vmatpush.msra.mxu0 %v1449
    %v1451 = vand.u32 %v1247, 4294901760
    %1452 = vmatpush.msra.mxu0 %v1451
    %v1453 = vand.u32 %v1246, 4294901760
    %1454 = vmatpush.msra.mxu0 %v1453
    %v1455 = vand.u32 %v1245, 4294901760
    %1456 = vmatpush.msra.mxu0 %v1455
    %v1457 = vand.u32 %v1244, 4294901760
    %1458 = vmatpush.msra.mxu0 %v1457
    %v1459 = vand.u32 %v1243, 4294901760
    %1460 = vmatpush.msra.mxu0 %v1459
    %v1461 = vand.u32 %v1242, 4294901760
    %1462 = vmatpush.msra.mxu0 %v1461
    %v1463 = vand.u32 %v1241, 4294901760
    %1464 = vmatpush.msra.mxu0 %v1463
    %v1465 = vand.u32 %v1240, 4294901760
    %1466 = vmatpush.msra.mxu0 %v1465
    %v1467 = vand.u32 %v1239, 4294901760
    %1468 = vmatpush.msra.mxu0 %v1467
    %v1469 = vand.u32 %v1238, 4294901760
    %1470 = vmatpush.msra.mxu0 %v1469
    %v1471 = vand.u32 %v1237, 4294901760
    %1472 = vmatpush.msra.mxu0 %v1471
    %v1473 = vand.u32 %v1236, 4294901760
    %1474 = vmatpush.msra.mxu0 %v1473
    %v1475 = vand.u32 %v1235, 4294901760
    %1476 = vmatpush.msra.mxu0 %v1475
    %v1477 = vand.u32 %v1234, 4294901760
    %1478 = vmatpush.msra.mxu0 %v1477
    %v1479 = vand.u32 %v1233, 4294901760
    %1480 = vmatpush.msra.mxu0 %v1479
    %v1481 = vand.u32 %v1232, 4294901760
    %v1482 = vsub.f32 %v1232, %v1481
    %v1483 = vand.u32 %v1482, 4294901760
    %1484 = vmatmul.f32.gmra.mxu0 %v1483
    %v1485 = vpop.f32.mrf.mxu0
    %v1486 = vadd.f32 %v1447, %v1485
    %1487 = vdwg.mxu0
    %v1488 = vand.u32 %v1248, 4294901760
    %v1489 = vsub.f32 %v1248, %v1488
    %v1490 = vand.u32 %v1489, 4294901760
    %1491 = vmatpush.msra.mxu0 %v1490
    %v1492 = vand.u32 %v1247, 4294901760
    %v1493 = vsub.f32 %v1247, %v1492
    %v1494 = vand.u32 %v1493, 4294901760
    %1495 = vmatpush.msra.mxu0 %v1494
    %v1496 = vand.u32 %v1246, 4294901760
    %v1497 = vsub.f32 %v1246, %v1496
    %v1498 = vand.u32 %v1497, 4294901760
    %1499 = vmatpush.msra.mxu0 %v1498
    %v1500 = vand.u32 %v1245, 4294901760
    %v1501 = vsub.f32 %v1245, %v1500
    %v1502 = vand.u32 %v1501, 4294901760
    %1503 = vmatpush.msra.mxu0 %v1502
    %v1504 = vand.u32 %v1244, 4294901760
    %v1505 = vsub.f32 %v1244, %v1504
    %v1506 = vand.u32 %v1505, 4294901760
    %1507 = vmatpush.msra.mxu0 %v1506
    %v1508 = vand.u32 %v1243, 4294901760
    %v1509 = vsub.f32 %v1243, %v1508
    %v1510 = vand.u32 %v1509, 4294901760
    %1511 = vmatpush.msra.mxu0 %v1510
    %v1512 = vand.u32 %v1242, 4294901760
    %v1513 = vsub.f32 %v1242, %v1512
    %v1514 = vand.u32 %v1513, 4294901760
    %1515 = vmatpush.msra.mxu0 %v1514
    %v1516 = vand.u32 %v1241, 4294901760
    %v1517 = vsub.f32 %v1241, %v1516
    %v1518 = vand.u32 %v1517, 4294901760
    %1519 = vmatpush.msra.mxu0 %v1518
    %v1520 = vand.u32 %v1240, 4294901760
    %v1521 = vsub.f32 %v1240, %v1520
    %v1522 = vand.u32 %v1521, 4294901760
    %1523 = vmatpush.msra.mxu0 %v1522
    %v1524 = vand.u32 %v1239, 4294901760
    %v1525 = vsub.f32 %v1239, %v1524
    %v1526 = vand.u32 %v1525, 4294901760
    %1527 = vmatpush.msra.mxu0 %v1526
    %v1528 = vand.u32 %v1238, 4294901760
    %v1529 = vsub.f32 %v1238, %v1528
    %v1530 = vand.u32 %v1529, 4294901760
    %1531 = vmatpush.msra.mxu0 %v1530
    %v1532 = vand.u32 %v1237, 4294901760
    %v1533 = vsub.f32 %v1237, %v1532
    %v1534 = vand.u32 %v1533, 4294901760
    %1535 = vmatpush.msra.mxu0 %v1534
    %v1536 = vand.u32 %v1236, 4294901760
    %v1537 = vsub.f32 %v1236, %v1536
    %v1538 = vand.u32 %v1537, 4294901760
    %1539 = vmatpush.msra.mxu0 %v1538
    %v1540 = vand.u32 %v1235, 4294901760
    %v1541 = vsub.f32 %v1235, %v1540
    %v1542 = vand.u32 %v1541, 4294901760
    %1543 = vmatpush.msra.mxu0 %v1542
    %v1544 = vand.u32 %v1234, 4294901760
    %v1545 = vsub.f32 %v1234, %v1544
    %v1546 = vand.u32 %v1545, 4294901760
    %1547 = vmatpush.msra.mxu0 %v1546
    %v1548 = vand.u32 %v1233, 4294901760
    %v1549 = vsub.f32 %v1233, %v1548
    %v1550 = vand.u32 %v1549, 4294901760
    %1551 = vmatpush.msra.mxu0 %v1550
    %v1552 = vand.u32 %v1232, 4294901760
    %1553 = vmatmul.f32.gmra.mxu0 %v1552
    %v1554 = vpop.f32.mrf.mxu0
    %v1555 = vadd.f32 %v1486, %v1554
    %1556 = vdwg.mxu0
    %v1557 = vand.u32 %v1248, 4294901760
    %1558 = vmatpush.msra.mxu0 %v1557
    %v1559 = vand.u32 %v1247, 4294901760
    %1560 = vmatpush.msra.mxu0 %v1559
    %v1561 = vand.u32 %v1246, 4294901760
    %1562 = vmatpush.msra.mxu0 %v1561
    %v1563 = vand.u32 %v1245, 4294901760
    %1564 = vmatpush.msra.mxu0 %v1563
    %v1565 = vand.u32 %v1244, 4294901760
    %1566 = vmatpush.msra.mxu0 %v1565
    %v1567 = vand.u32 %v1243, 4294901760
    %1568 = vmatpush.msra.mxu0 %v1567
    %v1569 = vand.u32 %v1242, 4294901760
    %1570 = vmatpush.msra.mxu0 %v1569
    %v1571 = vand.u32 %v1241, 4294901760
    %1572 = vmatpush.msra.mxu0 %v1571
    %v1573 = vand.u32 %v1240, 4294901760
    %1574 = vmatpush.msra.mxu0 %v1573
    %v1575 = vand.u32 %v1239, 4294901760
    %1576 = vmatpush.msra.mxu0 %v1575
    %v1577 = vand.u32 %v1238, 4294901760
    %1578 = vmatpush.msra.mxu0 %v1577
    %v1579 = vand.u32 %v1237, 4294901760
    %1580 = vmatpush.msra.mxu0 %v1579
    %v1581 = vand.u32 %v1236, 4294901760
    %1582 = vmatpush.msra.mxu0 %v1581
    %v1583 = vand.u32 %v1235, 4294901760
    %1584 = vmatpush.msra.mxu0 %v1583
    %v1585 = vand.u32 %v1234, 4294901760
    %1586 = vmatpush.msra.mxu0 %v1585
    %v1587 = vand.u32 %v1233, 4294901760
    %1588 = vmatpush.msra.mxu0 %v1587
    %v1589 = vand.u32 %v1232, 4294901760
    %1590 = vmatmul.f32.gmra.mxu0 %v1589
    %v1591 = vpop.f32.mrf.mxu0
    %v1592 = vadd.f32 %v1555, %v1591
    %1593 = vdwg.mxu0
    %v1594 = vmax.f32 %v1592, 0.0
    %v1595 = vld [vmem:[#allocation9] sm:$0xff]
    %v1596 = vld [vmem:[#allocation9 + $0x8] sm:$0xff]
    %v1597 = vld [vmem:[#allocation9 + $0x10] sm:$0xff]
    %v1598 = vld [vmem:[#allocation9 + $0x18] sm:$0xff]
    %v1599 = vld [vmem:[#allocation9 + $0x20] sm:$0xff]
    %v1600 = vld [vmem:[#allocation9 + $0x28] sm:$0xff]
    %v1601 = vld [vmem:[#allocation9 + $0x30] sm:$0xff]
    %v1602 = vld [vmem:[#allocation9 + $0x38] sm:$0xff]
    %v1603 = vld [vmem:[#allocation9 + $0x40] sm:$0xff]
    %v1604 = vld [vmem:[#allocation9 + $0x48] sm:$0xff]
    %v1605 = vld [vmem:[#allocation9 + $0x50] sm:$0xff]
    %v1606 = vld [vmem:[#allocation9 + $0x58] sm:$0xff]
    %v1607 = vld [vmem:[#allocation9 + $0x60] sm:$0xff]
    %v1608 = vld [vmem:[#allocation9 + $0x68] sm:$0xff]
    %v1609 = vld [vmem:[#allocation9 + $0x70] sm:$0xff]
    %v1610 = vld [vmem:[#allocation9 + $0x78] sm:$0xff]
    %v1611 = vld [vmem:[%s11] sm:$0x1]
    %v1613 = vperm.slane %v1611, 0
    %v1615 = vand.u32 %v1610, 4294901760
    %1616 = vmatpush.msra.mxu0 %v1615
    %v1617 = vand.u32 %v1609, 4294901760
    %1618 = vmatpush.msra.mxu0 %v1617
    %v1619 = vand.u32 %v1608, 4294901760
    %1620 = vmatpush.msra.mxu0 %v1619
    %v1621 = vand.u32 %v1607, 4294901760
    %1622 = vmatpush.msra.mxu0 %v1621
    %v1623 = vand.u32 %v1606, 4294901760
    %1624 = vmatpush.msra.mxu0 %v1623
    %v1625 = vand.u32 %v1605, 4294901760
    %1626 = vmatpush.msra.mxu0 %v1625
    %v1627 = vand.u32 %v1604, 4294901760
    %1628 = vmatpush.msra.mxu0 %v1627
    %v1629 = vand.u32 %v1603, 4294901760
    %1630 = vmatpush.msra.mxu0 %v1629
    %v1631 = vand.u32 %v1602, 4294901760
    %1632 = vmatpush.msra.mxu0 %v1631
    %v1633 = vand.u32 %v1601, 4294901760
    %1634 = vmatpush.msra.mxu0 %v1633
    %v1635 = vand.u32 %v1600, 4294901760
    %1636 = vmatpush.msra.mxu0 %v1635
    %v1637 = vand.u32 %v1599, 4294901760
    %1638 = vmatpush.msra.mxu0 %v1637
    %v1639 = vand.u32 %v1598, 4294901760
    %1640 = vmatpush.msra.mxu0 %v1639
    %v1641 = vand.u32 %v1597, 4294901760
    %1642 = vmatpush.msra.mxu0 %v1641
    %v1643 = vand.u32 %v1596, 4294901760
    %1644 = vmatpush.msra.mxu0 %v1643
    %v1645 = vand.u32 %v1595, 4294901760
    %1646 = vmatpush.msra.mxu0 %v1645
    %v1647 = vand.u32 %v1594, 4294901760
    %v1648 = vsub.f32 %v1594, %v1647
    %v1649 = vand.u32 %v1648, 4294901760
    %v1650 = vsub.f32 %v1648, %v1649
    %v1651 = vand.u32 %v1650, 4294901760
    %1652 = vmatmul.f32.gmra.mxu0 %v1651
    %v1653 = vpop.f32.mrf.mxu0
    %v1654 = vadd.f32 %v1613, %v1653
    %1655 = vdwg.mxu0
    %v1656 = vand.u32 %v1610, 4294901760
    %v1657 = vsub.f32 %v1610, %v1656
    %v1658 = vand.u32 %v1657, 4294901760
    %v1659 = vsub.f32 %v1657, %v1658
    %v1660 = vand.u32 %v1659, 4294901760
    %1661 = vmatpush.msra.mxu0 %v1660
    %v1662 = vand.u32 %v1609, 4294901760
    %v1663 = vsub.f32 %v1609, %v1662
    %v1664 = vand.u32 %v1663, 4294901760
    %v1665 = vsub.f32 %v1663, %v1664
    %v1666 = vand.u32 %v1665, 4294901760
    %1667 = vmatpush.msra.mxu0 %v1666
    %v1668 = vand.u32 %v1608, 4294901760
    %v1669 = vsub.f32 %v1608, %v1668
    %v1670 = vand.u32 %v1669, 4294901760
    %v1671 = vsub.f32 %v1669, %v1670
    %v1672 = vand.u32 %v1671, 4294901760
    %1673 = vmatpush.msra.mxu0 %v1672
    %v1674 = vand.u32 %v1607, 4294901760
    %v1675 = vsub.f32 %v1607, %v1674
    %v1676 = vand.u32 %v1675, 4294901760
    %v1677 = vsub.f32 %v1675, %v1676
    %v1678 = vand.u32 %v1677, 4294901760
    %1679 = vmatpush.msra.mxu0 %v1678
    %v1680 = vand.u32 %v1606, 4294901760
    %v1681 = vsub.f32 %v1606, %v1680
    %v1682 = vand.u32 %v1681, 4294901760
    %v1683 = vsub.f32 %v1681, %v1682
    %v1684 = vand.u32 %v1683, 4294901760
    %1685 = vmatpush.msra.mxu0 %v1684
    %v1686 = vand.u32 %v1605, 4294901760
    %v1687 = vsub.f32 %v1605, %v1686
    %v1688 = vand.u32 %v1687, 4294901760
    %v1689 = vsub.f32 %v1687, %v1688
    %v1690 = vand.u32 %v1689, 4294901760
    %1691 = vmatpush.msra.mxu0 %v1690
    %v1692 = vand.u32 %v1604, 4294901760
    %v1693 = vsub.f32 %v1604, %v1692
    %v1694 = vand.u32 %v1693, 4294901760
    %v1695 = vsub.f32 %v1693, %v1694
    %v1696 = vand.u32 %v1695, 4294901760
    %1697 = vmatpush.msra.mxu0 %v1696
    %v1698 = vand.u32 %v1603, 4294901760
    %v1699 = vsub.f32 %v1603, %v1698
    %v1700 = vand.u32 %v1699, 4294901760
    %v1701 = vsub.f32 %v1699, %v1700
    %v1702 = vand.u32 %v1701, 4294901760
    %1703 = vmatpush.msra.mxu0 %v1702
    %v1704 = vand.u32 %v1602, 4294901760
    %v1705 = vsub.f32 %v1602, %v1704
    %v1706 = vand.u32 %v1705, 4294901760
    %v1707 = vsub.f32 %v1705, %v1706
    %v1708 = vand.u32 %v1707, 4294901760
    %1709 = vmatpush.msra.mxu0 %v1708
    %v1710 = vand.u32 %v1601, 4294901760
    %v1711 = vsub.f32 %v1601, %v1710
    %v1712 = vand.u32 %v1711, 4294901760
    %v1713 = vsub.f32 %v1711, %v1712
    %v1714 = vand.u32 %v1713, 4294901760
    %1715 = vmatpush.msra.mxu0 %v1714
    %v1716 = vand.u32 %v1600, 4294901760
    %v1717 = vsub.f32 %v1600, %v1716
    %v1718 = vand.u32 %v1717, 4294901760
    %v1719 = vsub.f32 %v1717, %v1718
    %v1720 = vand.u32 %v1719, 4294901760
    %1721 = vmatpush.msra.mxu0 %v1720
    %v1722 = vand.u32 %v1599, 4294901760
    %v1723 = vsub.f32 %v1599, %v1722
    %v1724 = vand.u32 %v1723, 4294901760
    %v1725 = vsub.f32 %v1723, %v1724
    %v1726 = vand.u32 %v1725, 4294901760
    %1727 = vmatpush.msra.mxu0 %v1726
    %v1728 = vand.u32 %v1598, 4294901760
    %v1729 = vsub.f32 %v1598, %v1728
    %v1730 = vand.u32 %v1729, 4294901760
    %v1731 = vsub.f32 %v1729, %v1730
    %v1732 = vand.u32 %v1731, 4294901760
    %1733 = vmatpush.msra.mxu0 %v1732
    %v1734 = vand.u32 %v1597, 4294901760
    %v1735 = vsub.f32 %v1597, %v1734
    %v1736 = vand.u32 %v1735, 4294901760
    %v1737 = vsub.f32 %v1735, %v1736
    %v1738 = vand.u32 %v1737, 4294901760
    %1739 = vmatpush.msra.mxu0 %v1738
    %v1740 = vand.u32 %v1596, 4294901760
    %v1741 = vsub.f32 %v1596, %v1740
    %v1742 = vand.u32 %v1741, 4294901760
    %v1743 = vsub.f32 %v1741, %v1742
    %v1744 = vand.u32 %v1743, 4294901760
    %1745 = vmatpush.msra.mxu0 %v1744
    %v1746 = vand.u32 %v1595, 4294901760
    %v1747 = vsub.f32 %v1595, %v1746
    %v1748 = vand.u32 %v1747, 4294901760
    %v1749 = vsub.f32 %v1747, %v1748
    %v1750 = vand.u32 %v1749, 4294901760
    %1751 = vmatpush.msra.mxu0 %v1750
    %v1752 = vand.u32 %v1594, 4294901760
    %1753 = vmatmul.f32.gmra.mxu0 %v1752
    %v1754 = vpop.f32.mrf.mxu0
    %v1755 = vadd.f32 %v1654, %v1754
    %1756 = vdwg.mxu0
    %v1757 = vand.u32 %v1610, 4294901760
    %v1758 = vsub.f32 %v1610, %v1757
    %1759 = vmatpush.msra.mxu0 %v1758
    %v1760 = vand.u32 %v1609, 4294901760
    %v1761 = vsub.f32 %v1609, %v1760
    %1762 = vmatpush.msra.mxu0 %v1761
    %v1763 = vand.u32 %v1608, 4294901760
    %v1764 = vsub.f32 %v1608, %v1763
    %1765 = vmatpush.msra.mxu0 %v1764
    %v1766 = vand.u32 %v1607, 4294901760
    %v1767 = vsub.f32 %v1607, %v1766
    %1768 = vmatpush.msra.mxu0 %v1767
    %v1769 = vand.u32 %v1606, 4294901760
    %v1770 = vsub.f32 %v1606, %v1769
    %1771 = vmatpush.msra.mxu0 %v1770
    %v1772 = vand.u32 %v1605, 4294901760
    %v1773 = vsub.f32 %v1605, %v1772
    %1774 = vmatpush.msra.mxu0 %v1773
    %v1775 = vand.u32 %v1604, 4294901760
    %v1776 = vsub.f32 %v1604, %v1775
    %1777 = vmatpush.msra.mxu0 %v1776
    %v1778 = vand.u32 %v1603, 4294901760
    %v1779 = vsub.f32 %v1603, %v1778
    %1780 = vmatpush.msra.mxu0 %v1779
    %v1781 = vand.u32 %v1602, 4294901760
    %v1782 = vsub.f32 %v1602, %v1781
    %1783 = vmatpush.msra.mxu0 %v1782
    %v1784 = vand.u32 %v1601, 4294901760
    %v1785 = vsub.f32 %v1601, %v1784
    %1786 = vmatpush.msra.mxu0 %v1785
    %v1787 = vand.u32 %v1600, 4294901760
    %v1788 = vsub.f32 %v1600, %v1787
    %1789 = vmatpush.msra.mxu0 %v1788
    %v1790 = vand.u32 %v1599, 4294901760
    %v1791 = vsub.f32 %v1599, %v1790
    %1792 = vmatpush.msra.mxu0 %v1791
    %v1793 = vand.u32 %v1598, 4294901760
    %v1794 = vsub.f32 %v1598, %v1793
    %1795 = vmatpush.msra.mxu0 %v1794
    %v1796 = vand.u32 %v1597, 4294901760
    %v1797 = vsub.f32 %v1597, %v1796
    %1798 = vmatpush.msra.mxu0 %v1797
    %v1799 = vand.u32 %v1596, 4294901760
    %v1800 = vsub.f32 %v1596, %v1799
    %1801 = vmatpush.msra.mxu0 %v1800
    %v1802 = vand.u32 %v1595, 4294901760
    %v1803 = vsub.f32 %v1595, %v1802
    %1804 = vmatpush.msra.mxu0 %v1803
    %v1805 = vand.u32 %v1594, 4294901760
    %v1806 = vsub.f32 %v1594, %v1805
    %1807 = vmatmul.f32.gmra.mxu0 %v1806
    %v1808 = vpop.f32.mrf.mxu0
    %v1809 = vadd.f32 %v1755, %v1808
    %1810 = vdwg.mxu0
    %v1811 = vand.u32 %v1610, 4294901760
    %1812 = vmatpush.msra.mxu0 %v1811
    %v1813 = vand.u32 %v1609, 4294901760
    %1814 = vmatpush.msra.mxu0 %v1813
    %v1815 = vand.u32 %v1608, 4294901760
    %1816 = vmatpush.msra.mxu0 %v1815
    %v1817 = vand.u32 %v1607, 4294901760
    %1818 = vmatpush.msra.mxu0 %v1817
    %v1819 = vand.u32 %v1606, 4294901760
    %1820 = vmatpush.msra.mxu0 %v1819
    %v1821 = vand.u32 %v1605, 4294901760
    %1822 = vmatpush.msra.mxu0 %v1821
    %v1823 = vand.u32 %v1604, 4294901760
    %1824 = vmatpush.msra.mxu0 %v1823
    %v1825 = vand.u32 %v1603, 4294901760
    %1826 = vmatpush.msra.mxu0 %v1825
    %v1827 = vand.u32 %v1602, 4294901760
    %1828 = vmatpush.msra.mxu0 %v1827
    %v1829 = vand.u32 %v1601, 4294901760
    %1830 = vmatpush.msra.mxu0 %v1829
    %v1831 = vand.u32 %v1600, 4294901760
    %1832 = vmatpush.msra.mxu0 %v1831
    %v1833 = vand.u32 %v1599, 4294901760
    %1834 = vmatpush.msra.mxu0 %v1833
    %v1835 = vand.u32 %v1598, 4294901760
    %1836 = vmatpush.msra.mxu0 %v1835
    %v1837 = vand.u32 %v1597, 4294901760
    %1838 = vmatpush.msra.mxu0 %v1837
    %v1839 = vand.u32 %v1596, 4294901760
    %1840 = vmatpush.msra.mxu0 %v1839
    %v1841 = vand.u32 %v1595, 4294901760
    %1842 = vmatpush.msra.mxu0 %v1841
    %v1843 = vand.u32 %v1594, 4294901760
    %v1844 = vsub.f32 %v1594, %v1843
    %v1845 = vand.u32 %v1844, 4294901760
    %1846 = vmatmul.f32.gmra.mxu0 %v1845
    %v1847 = vpop.f32.mrf.mxu0
    %v1848 = vadd.f32 %v1809, %v1847
    %1849 = vdwg.mxu0
    %v1850 = vand.u32 %v1610, 4294901760
    %v1851 = vsub.f32 %v1610, %v1850
    %v1852 = vand.u32 %v1851, 4294901760
    %1853 = vmatpush.msra.mxu0 %v1852
    %v1854 = vand.u32 %v1609, 4294901760
    %v1855 = vsub.f32 %v1609, %v1854
    %v1856 = vand.u32 %v1855, 4294901760
    %1857 = vmatpush.msra.mxu0 %v1856
    %v1858 = vand.u32 %v1608, 4294901760
    %v1859 = vsub.f32 %v1608, %v1858
    %v1860 = vand.u32 %v1859, 4294901760
    %1861 = vmatpush.msra.mxu0 %v1860
    %v1862 = vand.u32 %v1607, 4294901760
    %v1863 = vsub.f32 %v1607, %v1862
    %v1864 = vand.u32 %v1863, 4294901760
    %1865 = vmatpush.msra.mxu0 %v1864
    %v1866 = vand.u32 %v1606, 4294901760
    %v1867 = vsub.f32 %v1606, %v1866
    %v1868 = vand.u32 %v1867, 4294901760
    %1869 = vmatpush.msra.mxu0 %v1868
    %v1870 = vand.u32 %v1605, 4294901760
    %v1871 = vsub.f32 %v1605, %v1870
    %v1872 = vand.u32 %v1871, 4294901760
    %1873 = vmatpush.msra.mxu0 %v1872
    %v1874 = vand.u32 %v1604, 4294901760
    %v1875 = vsub.f32 %v1604, %v1874
    %v1876 = vand.u32 %v1875, 4294901760
    %1877 = vmatpush.msra.mxu0 %v1876
    %v1878 = vand.u32 %v1603, 4294901760
    %v1879 = vsub.f32 %v1603, %v1878
    %v1880 = vand.u32 %v1879, 4294901760
    %1881 = vmatpush.msra.mxu0 %v1880
    %v1882 = vand.u32 %v1602, 4294901760
    %v1883 = vsub.f32 %v1602, %v1882
    %v1884 = vand.u32 %v1883, 4294901760
    %1885 = vmatpush.msra.mxu0 %v1884
    %v1886 = vand.u32 %v1601, 4294901760
    %v1887 = vsub.f32 %v1601, %v1886
    %v1888 = vand.u32 %v1887, 4294901760
    %1889 = vmatpush.msra.mxu0 %v1888
    %v1890 = vand.u32 %v1600, 4294901760
    %v1891 = vsub.f32 %v1600, %v1890
    %v1892 = vand.u32 %v1891, 4294901760
    %1893 = vmatpush.msra.mxu0 %v1892
    %v1894 = vand.u32 %v1599, 4294901760
    %v1895 = vsub.f32 %v1599, %v1894
    %v1896 = vand.u32 %v1895, 4294901760
    %1897 = vmatpush.msra.mxu0 %v1896
    %v1898 = vand.u32 %v1598, 4294901760
    %v1899 = vsub.f32 %v1598, %v1898
    %v1900 = vand.u32 %v1899, 4294901760
    %1901 = vmatpush.msra.mxu0 %v1900
    %v1902 = vand.u32 %v1597, 4294901760
    %v1903 = vsub.f32 %v1597, %v1902
    %v1904 = vand.u32 %v1903, 4294901760
    %1905 = vmatpush.msra.mxu0 %v1904
    %v1906 = vand.u32 %v1596, 4294901760
    %v1907 = vsub.f32 %v1596, %v1906
    %v1908 = vand.u32 %v1907, 4294901760
    %1909 = vmatpush.msra.mxu0 %v1908
    %v1910 = vand.u32 %v1595, 4294901760
    %v1911 = vsub.f32 %v1595, %v1910
    %v1912 = vand.u32 %v1911, 4294901760
    %1913 = vmatpush.msra.mxu0 %v1912
    %v1914 = vand.u32 %v1594, 4294901760
    %1915 = vmatmul.f32.gmra.mxu0 %v1914
    %v1916 = vpop.f32.mrf.mxu0
    %v1917 = vadd.f32 %v1848, %v1916
    %1918 = vdwg.mxu0
    %v1919 = vand.u32 %v1610, 4294901760
    %1920 = vmatpush.msra.mxu0 %v1919
    %v1921 = vand.u32 %v1609, 4294901760
    %1922 = vmatpush.msra.mxu0 %v1921
    %v1923 = vand.u32 %v1608, 4294901760
    %1924 = vmatpush.msra.mxu0 %v1923
    %v1925 = vand.u32 %v1607, 4294901760
    %1926 = vmatpush.msra.mxu0 %v1925
    %v1927 = vand.u32 %v1606, 4294901760
    %1928 = vmatpush.msra.mxu0 %v1927
    %v1929 = vand.u32 %v1605, 4294901760
    %1930 = vmatpush.msra.mxu0 %v1929
    %v1931 = vand.u32 %v1604, 4294901760
    %1932 = vmatpush.msra.mxu0 %v1931
    %v1933 = vand.u32 %v1603, 4294901760
    %1934 = vmatpush.msra.mxu0 %v1933
    %v1935 = vand.u32 %v1602, 4294901760
    %1936 = vmatpush.msra.mxu0 %v1935
    %v1937 = vand.u32 %v1601, 4294901760
    %1938 = vmatpush.msra.mxu0 %v1937
    %v1939 = vand.u32 %v1600, 4294901760
    %1940 = vmatpush.msra.mxu0 %v1939
    %v1941 = vand.u32 %v1599, 4294901760
    %1942 = vmatpush.msra.mxu0 %v1941
    %v1943 = vand.u32 %v1598, 4294901760
    %1944 = vmatpush.msra.mxu0 %v1943
    %v1945 = vand.u32 %v1597, 4294901760
    %1946 = vmatpush.msra.mxu0 %v1945
    %v1947 = vand.u32 %v1596, 4294901760
    %1948 = vmatpush.msra.mxu0 %v1947
    %v1949 = vand.u32 %v1595, 4294901760
    %1950 = vmatpush.msra.mxu0 %v1949
    %v1951 = vand.u32 %v1594, 4294901760
    %1952 = vmatmul.f32.gmra.mxu0 %v1951
    %v1953 = vpop.f32.mrf.mxu0
    %v1954 = vadd.f32 %v1917, %v1953
    %1955 = vdwg.mxu0
    %v1956 = vmax.f32 %v1954, 0.0
    %v1957 = vld [vmem:[#allocation10] sm:$0xff]
    %v1958 = vld [vmem:[#allocation10 + $0x8] sm:$0xff]
    %v1959 = vld [vmem:[#allocation10 + $0x10] sm:$0xff]
    %v1960 = vld [vmem:[#allocation10 + $0x18] sm:$0xff]
    %v1961 = vld [vmem:[#allocation10 + $0x20] sm:$0xff]
    %v1962 = vld [vmem:[#allocation10 + $0x28] sm:$0xff]
    %v1963 = vld [vmem:[#allocation10 + $0x30] sm:$0xff]
    %v1964 = vld [vmem:[#allocation10 + $0x38] sm:$0xff]
    %v1965 = vld [vmem:[#allocation10 + $0x40] sm:$0xff]
    %v1966 = vld [vmem:[#allocation10 + $0x48] sm:$0xff]
    %v1967 = vld [vmem:[#allocation10 + $0x50] sm:$0xff]
    %v1968 = vld [vmem:[#allocation10 + $0x58] sm:$0xff]
    %v1969 = vld [vmem:[#allocation10 + $0x60] sm:$0xff]
    %v1970 = vld [vmem:[#allocation10 + $0x68] sm:$0xff]
    %v1971 = vld [vmem:[#allocation10 + $0x70] sm:$0xff]
    %v1972 = vld [vmem:[#allocation10 + $0x78] sm:$0xff]
    %v1973 = vld [vmem:[%s13] sm:$0x1]
    %v1975 = vperm.slane %v1973, 0
    %v1977 = vand.u32 %v1972, 4294901760
    %1978 = vmatpush.msra.mxu0 %v1977
    %v1979 = vand.u32 %v1971, 4294901760
    %1980 = vmatpush.msra.mxu0 %v1979
    %v1981 = vand.u32 %v1970, 4294901760
    %1982 = vmatpush.msra.mxu0 %v1981
    %v1983 = vand.u32 %v1969, 4294901760
    %1984 = vmatpush.msra.mxu0 %v1983
    %v1985 = vand.u32 %v1968, 4294901760
    %1986 = vmatpush.msra.mxu0 %v1985
    %v1987 = vand.u32 %v1967, 4294901760
    %1988 = vmatpush.msra.mxu0 %v1987
    %v1989 = vand.u32 %v1966, 4294901760
    %1990 = vmatpush.msra.mxu0 %v1989
    %v1991 = vand.u32 %v1965, 4294901760
    %1992 = vmatpush.msra.mxu0 %v1991
    %v1993 = vand.u32 %v1964, 4294901760
    %1994 = vmatpush.msra.mxu0 %v1993
    %v1995 = vand.u32 %v1963, 4294901760
    %1996 = vmatpush.msra.mxu0 %v1995
    %v1997 = vand.u32 %v1962, 4294901760
    %1998 = vmatpush.msra.mxu0 %v1997
    %v1999 = vand.u32 %v1961, 4294901760
    %2000 = vmatpush.msra.mxu0 %v1999
    %v2001 = vand.u32 %v1960, 4294901760
    %2002 = vmatpush.msra.mxu0 %v2001
    %v2003 = vand.u32 %v1959, 4294901760
    %2004 = vmatpush.msra.mxu0 %v2003
    %v2005 = vand.u32 %v1958, 4294901760
    %2006 = vmatpush.msra.mxu0 %v2005
    %v2007 = vand.u32 %v1957, 4294901760
    %2008 = vmatpush.msra.mxu0 %v2007
    %v2009 = vand.u32 %v1956, 4294901760
    %v2010 = vsub.f32 %v1956, %v2009
    %v2011 = vand.u32 %v2010, 4294901760
    %v2012 = vsub.f32 %v2010, %v2011
    %v2013 = vand.u32 %v2012, 4294901760
    %2014 = vmatmul.f32.gmra.mxu0 %v2013
    %v2015 = vpop.f32.mrf.mxu0
    %v2016 = vadd.f32 %v1975, %v2015
    %2017 = vdwg.mxu0
    %v2018 = vand.u32 %v1972, 4294901760
    %v2019 = vsub.f32 %v1972, %v2018
    %v2020 = vand.u32 %v2019, 4294901760
    %v2021 = vsub.f32 %v2019, %v2020
    %v2022 = vand.u32 %v2021, 4294901760
    %2023 = vmatpush.msra.mxu0 %v2022
    %v2024 = vand.u32 %v1971, 4294901760
    %v2025 = vsub.f32 %v1971, %v2024
    %v2026 = vand.u32 %v2025, 4294901760
    %v2027 = vsub.f32 %v2025, %v2026
    %v2028 = vand.u32 %v2027, 4294901760
    %2029 = vmatpush.msra.mxu0 %v2028
    %v2030 = vand.u32 %v1970, 4294901760
    %v2031 = vsub.f32 %v1970, %v2030
    %v2032 = vand.u32 %v2031, 4294901760
    %v2033 = vsub.f32 %v2031, %v2032
    %v2034 = vand.u32 %v2033, 4294901760
    %2035 = vmatpush.msra.mxu0 %v2034
    %v2036 = vand.u32 %v1969, 4294901760
    %v2037 = vsub.f32 %v1969, %v2036
    %v2038 = vand.u32 %v2037, 4294901760
    %v2039 = vsub.f32 %v2037, %v2038
    %v2040 = vand.u32 %v2039, 4294901760
    %2041 = vmatpush.msra.mxu0 %v2040
    %v2042 = vand.u32 %v1968, 4294901760
    %v2043 = vsub.f32 %v1968, %v2042
    %v2044 = vand.u32 %v2043, 4294901760
    %v2045 = vsub.f32 %v2043, %v2044
    %v2046 = vand.u32 %v2045, 4294901760
    %2047 = vmatpush.msra.mxu0 %v2046
    %v2048 = vand.u32 %v1967, 4294901760
    %v2049 = vsub.f32 %v1967, %v2048
    %v2050 = vand.u32 %v2049, 4294901760
    %v2051 = vsub.f32 %v2049, %v2050
    %v2052 = vand.u32 %v2051, 4294901760
    %2053 = vmatpush.msra.mxu0 %v2052
    %v2054 = vand.u32 %v1966, 4294901760
    %v2055 = vsub.f32 %v1966, %v2054
    %v2056 = vand.u32 %v2055, 4294901760
    %v2057 = vsub.f32 %v2055, %v2056
    %v2058 = vand.u32 %v2057, 4294901760
    %2059 = vmatpush.msra.mxu0 %v2058
    %v2060 = vand.u32 %v1965, 4294901760
    %v2061 = vsub.f32 %v1965, %v2060
    %v2062 = vand.u32 %v2061, 4294901760
    %v2063 = vsub.f32 %v2061, %v2062
    %v2064 = vand.u32 %v2063, 4294901760
    %2065 = vmatpush.msra.mxu0 %v2064
    %v2066 = vand.u32 %v1964, 4294901760
    %v2067 = vsub.f32 %v1964, %v2066
    %v2068 = vand.u32 %v2067, 4294901760
    %v2069 = vsub.f32 %v2067, %v2068
    %v2070 = vand.u32 %v2069, 4294901760
    %2071 = vmatpush.msra.mxu0 %v2070
    %v2072 = vand.u32 %v1963, 4294901760
    %v2073 = vsub.f32 %v1963, %v2072
    %v2074 = vand.u32 %v2073, 4294901760
    %v2075 = vsub.f32 %v2073, %v2074
    %v2076 = vand.u32 %v2075, 4294901760
    %2077 = vmatpush.msra.mxu0 %v2076
    %v2078 = vand.u32 %v1962, 4294901760
    %v2079 = vsub.f32 %v1962, %v2078
    %v2080 = vand.u32 %v2079, 4294901760
    %v2081 = vsub.f32 %v2079, %v2080
    %v2082 = vand.u32 %v2081, 4294901760
    %2083 = vmatpush.msra.mxu0 %v2082
    %v2084 = vand.u32 %v1961, 4294901760
    %v2085 = vsub.f32 %v1961, %v2084
    %v2086 = vand.u32 %v2085, 4294901760
    %v2087 = vsub.f32 %v2085, %v2086
    %v2088 = vand.u32 %v2087, 4294901760
    %2089 = vmatpush.msra.mxu0 %v2088
    %v2090 = vand.u32 %v1960, 4294901760
    %v2091 = vsub.f32 %v1960, %v2090
    %v2092 = vand.u32 %v2091, 4294901760
    %v2093 = vsub.f32 %v2091, %v2092
    %v2094 = vand.u32 %v2093, 4294901760
    %2095 = vmatpush.msra.mxu0 %v2094
    %v2096 = vand.u32 %v1959, 4294901760
    %v2097 = vsub.f32 %v1959, %v2096
    %v2098 = vand.u32 %v2097, 4294901760
    %v2099 = vsub.f32 %v2097, %v2098
    %v2100 = vand.u32 %v2099, 4294901760
    %2101 = vmatpush.msra.mxu0 %v2100
    %v2102 = vand.u32 %v1958, 4294901760
    %v2103 = vsub.f32 %v1958, %v2102
    %v2104 = vand.u32 %v2103, 4294901760
    %v2105 = vsub.f32 %v2103, %v2104
    %v2106 = vand.u32 %v2105, 4294901760
    %2107 = vmatpush.msra.mxu0 %v2106
    %v2108 = vand.u32 %v1957, 4294901760
    %v2109 = vsub.f32 %v1957, %v2108
    %v2110 = vand.u32 %v2109, 4294901760
    %v2111 = vsub.f32 %v2109, %v2110
    %v2112 = vand.u32 %v2111, 4294901760
    %2113 = vmatpush.msra.mxu0 %v2112
    %v2114 = vand.u32 %v1956, 4294901760
    %2115 = vmatmul.f32.gmra.mxu0 %v2114
    %v2116 = vpop.f32.mrf.mxu0
    %v2117 = vadd.f32 %v2016, %v2116
    %2118 = vdwg.mxu0
    %v2119 = vand.u32 %v1972, 4294901760
    %v2120 = vsub.f32 %v1972, %v2119
    %2121 = vmatpush.msra.mxu0 %v2120
    %v2122 = vand.u32 %v1971, 4294901760
    %v2123 = vsub.f32 %v1971, %v2122
    %2124 = vmatpush.msra.mxu0 %v2123
    %v2125 = vand.u32 %v1970, 4294901760
    %v2126 = vsub.f32 %v1970, %v2125
    %2127 = vmatpush.msra.mxu0 %v2126
    %v2128 = vand.u32 %v1969, 4294901760
    %v2129 = vsub.f32 %v1969, %v2128
    %2130 = vmatpush.msra.mxu0 %v2129
    %v2131 = vand.u32 %v1968, 4294901760
    %v2132 = vsub.f32 %v1968, %v2131
    %2133 = vmatpush.msra.mxu0 %v2132
    %v2134 = vand.u32 %v1967, 4294901760
    %v2135 = vsub.f32 %v1967, %v2134
    %2136 = vmatpush.msra.mxu0 %v2135
    %v2137 = vand.u32 %v1966, 4294901760
    %v2138 = vsub.f32 %v1966, %v2137
    %2139 = vmatpush.msra.mxu0 %v2138
    %v2140 = vand.u32 %v1965, 4294901760
    %v2141 = vsub.f32 %v1965, %v2140
    %2142 = vmatpush.msra.mxu0 %v2141
    %v2143 = vand.u32 %v1964, 4294901760
    %v2144 = vsub.f32 %v1964, %v2143
    %2145 = vmatpush.msra.mxu0 %v2144
    %v2146 = vand.u32 %v1963, 4294901760
    %v2147 = vsub.f32 %v1963, %v2146
    %2148 = vmatpush.msra.mxu0 %v2147
    %v2149 = vand.u32 %v1962, 4294901760
    %v2150 = vsub.f32 %v1962, %v2149
    %2151 = vmatpush.msra.mxu0 %v2150
    %v2152 = vand.u32 %v1961, 4294901760
    %v2153 = vsub.f32 %v1961, %v2152
    %2154 = vmatpush.msra.mxu0 %v2153
    %v2155 = vand.u32 %v1960, 4294901760
    %v2156 = vsub.f32 %v1960, %v2155
    %2157 = vmatpush.msra.mxu0 %v2156
    %v2158 = vand.u32 %v1959, 4294901760
    %v2159 = vsub.f32 %v1959, %v2158
    %2160 = vmatpush.msra.mxu0 %v2159
    %v2161 = vand.u32 %v1958, 4294901760
    %v2162 = vsub.f32 %v1958, %v2161
    %2163 = vmatpush.msra.mxu0 %v2162
    %v2164 = vand.u32 %v1957, 4294901760
    %v2165 = vsub.f32 %v1957, %v2164
    %2166 = vmatpush.msra.mxu0 %v2165
    %v2167 = vand.u32 %v1956, 4294901760
    %v2168 = vsub.f32 %v1956, %v2167
    %2169 = vmatmul.f32.gmra.mxu0 %v2168
    %v2170 = vpop.f32.mrf.mxu0
    %v2171 = vadd.f32 %v2117, %v2170
    %2172 = vdwg.mxu0
    %v2173 = vand.u32 %v1972, 4294901760
    %2174 = vmatpush.msra.mxu0 %v2173
    %v2175 = vand.u32 %v1971, 4294901760
    %2176 = vmatpush.msra.mxu0 %v2175
    %v2177 = vand.u32 %v1970, 4294901760
    %2178 = vmatpush.msra.mxu0 %v2177
    %v2179 = vand.u32 %v1969, 4294901760
    %2180 = vmatpush.msra.mxu0 %v2179
    %v2181 = vand.u32 %v1968, 4294901760
    %2182 = vmatpush.msra.mxu0 %v2181
    %v2183 = vand.u32 %v1967, 4294901760
    %2184 = vmatpush.msra.mxu0 %v2183
    %v2185 = vand.u32 %v1966, 4294901760
    %2186 = vmatpush.msra.mxu0 %v2185
    %v2187 = vand.u32 %v1965, 4294901760
    %2188 = vmatpush.msra.mxu0 %v2187
    %v2189 = vand.u32 %v1964, 4294901760
    %2190 = vmatpush.msra.mxu0 %v2189
    %v2191 = vand.u32 %v1963, 4294901760
    %2192 = vmatpush.msra.mxu0 %v2191
    %v2193 = vand.u32 %v1962, 4294901760
    %2194 = vmatpush.msra.mxu0 %v2193
    %v2195 = vand.u32 %v1961, 4294901760
    %2196 = vmatpush.msra.mxu0 %v2195
    %v2197 = vand.u32 %v1960, 4294901760
    %2198 = vmatpush.msra.mxu0 %v2197
    %v2199 = vand.u32 %v1959, 4294901760
    %2200 = vmatpush.msra.mxu0 %v2199
    %v2201 = vand.u32 %v1958, 4294901760
    %2202 = vmatpush.msra.mxu0 %v2201
    %v2203 = vand.u32 %v1957, 4294901760
    %2204 = vmatpush.msra.mxu0 %v2203
    %v2205 = vand.u32 %v1956, 4294901760
    %v2206 = vsub.f32 %v1956, %v2205
    %v2207 = vand.u32 %v2206, 4294901760
    %2208 = vmatmul.f32.gmra.mxu0 %v2207
    %v2209 = vpop.f32.mrf.mxu0
    %v2210 = vadd.f32 %v2171, %v2209
    %2211 = vdwg.mxu0
    %v2212 = vand.u32 %v1972, 4294901760
    %v2213 = vsub.f32 %v1972, %v2212
    %v2214 = vand.u32 %v2213, 4294901760
    %2215 = vmatpush.msra.mxu0 %v2214
    %v2216 = vand.u32 %v1971, 4294901760
    %v2217 = vsub.f32 %v1971, %v2216
    %v2218 = vand.u32 %v2217, 4294901760
    %2219 = vmatpush.msra.mxu0 %v2218
    %v2220 = vand.u32 %v1970, 4294901760
    %v2221 = vsub.f32 %v1970, %v2220
    %v2222 = vand.u32 %v2221, 4294901760
    %2223 = vmatpush.msra.mxu0 %v2222
    %v2224 = vand.u32 %v1969, 4294901760
    %v2225 = vsub.f32 %v1969, %v2224
    %v2226 = vand.u32 %v2225, 4294901760
    %2227 = vmatpush.msra.mxu0 %v2226
    %v2228 = vand.u32 %v1968, 4294901760
    %v2229 = vsub.f32 %v1968, %v2228
    %v2230 = vand.u32 %v2229, 4294901760
    %2231 = vmatpush.msra.mxu0 %v2230
    %v2232 = vand.u32 %v1967, 4294901760
    %v2233 = vsub.f32 %v1967, %v2232
    %v2234 = vand.u32 %v2233, 4294901760
    %2235 = vmatpush.msra.mxu0 %v2234
    %v2236 = vand.u32 %v1966, 4294901760
    %v2237 = vsub.f32 %v1966, %v2236
    %v2238 = vand.u32 %v2237, 4294901760
    %2239 = vmatpush.msra.mxu0 %v2238
    %v2240 = vand.u32 %v1965, 4294901760
    %v2241 = vsub.f32 %v1965, %v2240
    %v2242 = vand.u32 %v2241, 4294901760
    %2243 = vmatpush.msra.mxu0 %v2242
    %v2244 = vand.u32 %v1964, 4294901760
    %v2245 = vsub.f32 %v1964, %v2244
    %v2246 = vand.u32 %v2245, 4294901760
    %2247 = vmatpush.msra.mxu0 %v2246
    %v2248 = vand.u32 %v1963, 4294901760
    %v2249 = vsub.f32 %v1963, %v2248
    %v2250 = vand.u32 %v2249, 4294901760
    %2251 = vmatpush.msra.mxu0 %v2250
    %v2252 = vand.u32 %v1962, 4294901760
    %v2253 = vsub.f32 %v1962, %v2252
    %v2254 = vand.u32 %v2253, 4294901760
    %2255 = vmatpush.msra.mxu0 %v2254
    %v2256 = vand.u32 %v1961, 4294901760
    %v2257 = vsub.f32 %v1961, %v2256
    %v2258 = vand.u32 %v2257, 4294901760
    %2259 = vmatpush.msra.mxu0 %v2258
    %v2260 = vand.u32 %v1960, 4294901760
    %v2261 = vsub.f32 %v1960, %v2260
    %v2262 = vand.u32 %v2261, 4294901760
    %2263 = vmatpush.msra.mxu0 %v2262
    %v2264 = vand.u32 %v1959, 4294901760
    %v2265 = vsub.f32 %v1959, %v2264
    %v2266 = vand.u32 %v2265, 4294901760
    %2267 = vmatpush.msra.mxu0 %v2266
    %v2268 = vand.u32 %v1958, 4294901760
    %v2269 = vsub.f32 %v1958, %v2268
    %v2270 = vand.u32 %v2269, 4294901760
    %2271 = vmatpush.msra.mxu0 %v2270
    %v2272 = vand.u32 %v1957, 4294901760
    %v2273 = vsub.f32 %v1957, %v2272
    %v2274 = vand.u32 %v2273, 4294901760
    %2275 = vmatpush.msra.mxu0 %v2274
    %v2276 = vand.u32 %v1956, 4294901760
    %2277 = vmatmul.f32.gmra.mxu0 %v2276
    %v2278 = vpop.f32.mrf.mxu0
    %v2279 = vadd.f32 %v2210, %v2278
    %2280 = vdwg.mxu0
    %v2281 = vand.u32 %v1972, 4294901760
    %2282 = vmatpush.msra.mxu0 %v2281
    %v2283 = vand.u32 %v1971, 4294901760
    %2284 = vmatpush.msra.mxu0 %v2283
    %v2285 = vand.u32 %v1970, 4294901760
    %2286 = vmatpush.msra.mxu0 %v2285
    %v2287 = vand.u32 %v1969, 4294901760
    %2288 = vmatpush.msra.mxu0 %v2287
    %v2289 = vand.u32 %v1968, 4294901760
    %2290 = vmatpush.msra.mxu0 %v2289
    %v2291 = vand.u32 %v1967, 4294901760
    %2292 = vmatpush.msra.mxu0 %v2291
    %v2293 = vand.u32 %v1966, 4294901760
    %2294 = vmatpush.msra.mxu0 %v2293
    %v2295 = vand.u32 %v1965, 4294901760
    %2296 = vmatpush.msra.mxu0 %v2295
    %v2297 = vand.u32 %v1964, 4294901760
    %2298 = vmatpush.msra.mxu0 %v2297
    %v2299 = vand.u32 %v1963, 4294901760
    %2300 = vmatpush.msra.mxu0 %v2299
    %v2301 = vand.u32 %v1962, 4294901760
    %2302 = vmatpush.msra.mxu0 %v2301
    %v2303 = vand.u32 %v1961, 4294901760
    %2304 = vmatpush.msra.mxu0 %v2303
    %v2305 = vand.u32 %v1960, 4294901760
    %2306 = vmatpush.msra.mxu0 %v2305
    %v2307 = vand.u32 %v1959, 4294901760
    %2308 = vmatpush.msra.mxu0 %v2307
    %v2309 = vand.u32 %v1958, 4294901760
    %2310 = vmatpush.msra.mxu0 %v2309
    %v2311 = vand.u32 %v1957, 4294901760
    %2312 = vmatpush.msra.mxu0 %v2311
    %v2313 = vand.u32 %v1956, 4294901760
    %2314 = vmatmul.f32.gmra.mxu0 %v2313
    %v2315 = vpop.f32.mrf.mxu0
    %v2316 = vadd.f32 %v2279, %v2315
    %2317 = vdwg.mxu0
    %v2318 = vadd.f32 %v2316, %v144
    %2319 = vst [vmem:[%s14] sm:$0xff] %v2318
    // Predicated region
    $region82: #{mlp_forward.1} parent=1 // pred_check
      _
    $region83: #{mlp_forward.1} parent=1 // pred_check_branch
      %2321 = sbr.rel (0) target = $region85
    $region84: #{mlp_forward.1} parent=1 // pred_region
      _
    $region85: #{mlp_forward.1} parent=1 // pred_fallthru
      _
    // Predicated region
    $region86: #{mlp_forward.1} parent=1 // pred_check
      _
    $region87: #{mlp_forward.1} parent=1 // pred_check_branch
      %2323 = sbr.rel (0) target = $region89
    $region88: #{mlp_forward.1} parent=1 // pred_region
      _
    $region89: #{mlp_forward.1} parent=1 // pred_fallthru
      _
    %2324 = vsyncpa [#allocation3], 1
    %2325 = vsyncpa [#allocation5], 1
    %2326 = vsyncpa [#allocation8], 1
    %2327 = vsyncpa [#allocation11], 1

</llo_original>
